<compile_context>
chip_gen: v5e
topology: v5e:2x2
jax: 0.10.0
libtpu: 0.0.40
codegen_flags: <defaults>
</compile_context>

<pallas_src>
import functools

import jax
import jax.numpy as jnp
from jax.experimental import pallas as pl
from jax.experimental.pallas import tpu as pltpu

LATENT_DIMS = 2
IN_FEATURES = 784
HIDDEN = 512
LANE = 128
K_PAD = 896            # 7 * 128
HEAD_N = 2 * LANE      # fused [mu | log_sigma] head, lane-padded
TB_MAX = 512           # batch tile rows


def _round_up(n, m):
    return ((n + m - 1) // m) * m


def _vae_encoder_kernel(x_ref, w1_ref, b1_ref, wh_ref, bh_ref, eps_ref,
                        z_ref, kl_ref, *, batch, tile):
    # Layer 1: (TB, 896) bf16 @ (896, 512) bf16 -> f32 acc; bias + ReLU on the VPU.
    h = jnp.dot(x_ref[...], w1_ref[...], preferred_element_type=jnp.float32)
    h = jnp.maximum(h + b1_ref[...], 0.0)

    # Fused heads: one MXU pass producing [mu | log_sigma], each lane-padded to 128.
    head = jnp.dot(h.astype(jnp.bfloat16), wh_ref[...],
                   preferred_element_type=jnp.float32) + bh_ref[...]
    mu = head[:, :LANE]            # valid in lanes [0, LATENT_DIMS)
    log_sigma = head[:, LANE:]     # valid in lanes [0, LATENT_DIMS)
    sigma = jnp.exp(log_sigma)

    # Reparameterization trick; eps is zero in padded lanes/rows, sliced away outside.
    z_ref[...] = mu + sigma * eps_ref[...]

    # KL partial for this tile, masked to valid rows (< batch) and lanes (< latent).
    row = jax.lax.broadcasted_iota(jnp.int32, (tile, LANE), 0) + pl.program_id(0) * tile
    lane = jax.lax.broadcasted_iota(jnp.int32, (tile, LANE), 1)
    valid = (row < batch) & (lane < LATENT_DIMS)
    kl_term = sigma * sigma + mu * mu - log_sigma - 0.5
    kl_ref[0, 0] = jnp.sum(jnp.where(valid, kl_term, 0.0))


def variational_encoder(x_nchw, kernel_params, eps):
    """Forward pass of VariationalEncoder. Returns (z, kl)."""
    w1_p, b1, w_head, b_head = kernel_params

    B = x_nchw.shape[0]
    x2d = x_nchw.reshape(B, -1).astype(jnp.float32)   # torch.flatten(x, start_dim=1)
    assert x2d.shape[1] == IN_FEATURES

    TB = min(TB_MAX, _round_up(B, 8))
    B_pad = _round_up(B, TB)
    num_tiles = B_pad // TB

    # Zero-pad batch (to TB multiple) and K (784 -> 896); cast activations to bf16.
    x_pad = jnp.pad(x2d, ((0, B_pad - B), (0, K_PAD - IN_FEATURES))).astype(jnp.bfloat16)
    eps_pad = jnp.pad(eps.astype(jnp.float32),
                      ((0, B_pad - B), (0, LANE - LATENT_DIMS)))

    kernel = functools.partial(_vae_encoder_kernel, batch=B, tile=TB)

    bytes_accessed = (x_pad.size * 2 + w1_p.size * 2 + w_head.size * 2 +
                      (b1.size + b_head.size) * 4 +
                      eps_pad.size * 4 + B_pad * LANE * 4 + num_tiles * 4)
    cost = pl.CostEstimate(
        flops=2 * B_pad * (K_PAD * HIDDEN + HIDDEN * HEAD_N),
        transcendentals=B_pad * LANE,
        bytes_accessed=bytes_accessed,
    )

    z_pad, kl_partial = pl.pallas_call(
        kernel,
        grid=(num_tiles,),
        in_specs=[
            pl.BlockSpec((TB, K_PAD), lambda i: (i, 0)),         # x tile (pipelined)
            pl.BlockSpec((K_PAD, HIDDEN), lambda i: (0, 0)),     # w1 (resident)
            pl.BlockSpec((1, HIDDEN), lambda i: (0, 0)),         # b1 (resident)
            pl.BlockSpec((HIDDEN, HEAD_N), lambda i: (0, 0)),    # fused head W (resident)
            pl.BlockSpec((1, HEAD_N), lambda i: (0, 0)),         # fused head b (resident)
            pl.BlockSpec((TB, LANE), lambda i: (i, 0)),          # eps tile
        ],
        out_specs=(
            pl.BlockSpec((TB, LANE), lambda i: (i, 0)),          # lane-dense z slab
            pl.BlockSpec((1, 1), lambda i: (i, 0),
                         memory_space=pltpu.MemorySpace.SMEM),   # per-tile KL partial
        ),
        out_shape=(
            jax.ShapeDtypeStruct((B_pad, LANE), jnp.float32),
            jax.ShapeDtypeStruct((num_tiles, 1), jnp.float32),
        ),
        compiler_params=pltpu.CompilerParams(
            dimension_semantics=("parallel",),
        ),
        cost_estimate=cost,
    )(x_pad, w1_p, b1, w_head, b_head, eps_pad)

    z = z_pad[:B, :LATENT_DIMS]
    kl = jnp.sum(kl_partial)
    return z, kl


def init_params(key):
    """f32 params matching nn.Linear shapes (stored transposed: (in, out))."""
    k1, k2, k3, k4, k5, k6 = jax.random.split(key, 6)

    def linear_init(kw, kb, fan_in, fan_out):
        bound = 1.0 / jnp.sqrt(fan_in)
        w = jax.random.uniform(kw, (fan_in, fan_out), jnp.float32, -bound, bound)
        b = jax.random.uniform(kb, (1, fan_out), jnp.float32, -bound, bound)
        return w, b

    w1, b1 = linear_init(k1, k2, IN_FEATURES, HIDDEN)
    w2, b2 = linear_init(k3, k4, HIDDEN, LATENT_DIMS)
    w3, b3 = linear_init(k5, k6, HIDDEN, LATENT_DIMS)
    return (w1, b1, w2, b2, w3, b3)


def prepare_params(params):
    """One-time repack: pad K to 896, fuse & lane-pad the two heads, cast to bf16."""
    w1, b1, w2, b2, w3, b3 = params

    w1_p = jnp.pad(w1, ((0, K_PAD - IN_FEATURES), (0, 0))).astype(jnp.bfloat16)

    w_head = jnp.zeros((HIDDEN, HEAD_N), jnp.float32)
    w_head = w_head.at[:, :LATENT_DIMS].set(w2)
    w_head = w_head.at[:, LANE:LANE + LATENT_DIMS].set(w3)
    w_head = w_head.astype(jnp.bfloat16)

    b_head = jnp.zeros((1, HEAD_N), jnp.float32)
    b_head = b_head.at[:, :LATENT_DIMS].set(b2)
    b_head = b_head.at[:, LANE:LANE + LATENT_DIMS].set(b3)

    return (w1_p, b1.astype(jnp.float32), w_head, b_head)


def reference(x_nchw, params, eps):
    """Plain-JAX f32 reference of the PyTorch forward, for verification."""
    w1, b1, w2, b2, w3, b3 = params
    x = x_nchw.reshape(x_nchw.shape[0], -1).astype(jnp.float32)
    h = jnp.maximum(x @ w1 + b1, 0.0)
    mu = h @ w2 + b2
    sigma = jnp.exp(h @ w3 + b3)
    z = mu + sigma * eps
    kl = jnp.sum(sigma ** 2 + mu ** 2 - jnp.log(sigma) - 0.5)
    return z, kl


if __name__ == "__main__":
    key = jax.random.PRNGKey(0)
    k_x, k_p, k_eps = jax.random.split(key, 3)

    B = 2
    x = jax.random.normal(k_x, (B, 1, 28, 28), jnp.float32)     # NCHW, 1*28*28 = 784
    params = init_params(k_p)
    kernel_params = prepare_params(params)                      # done once, not per call
    # N.sample(mu.shape): standard normal noise, drawn deterministically here.
    eps = jax.random.normal(k_eps, (B, LATENT_DIMS), jnp.float32)

    z, kl = variational_encoder(x, kernel_params, eps)
    jax.block_until_ready((z, kl))

    z_ref, kl_ref = reference(x, params, eps)
    # bf16 MXU inputs (f32 accumulation) -> tolerances loosened accordingly.
    assert z.shape == (B, LATENT_DIMS)
    assert jnp.allclose(z, z_ref, atol=5e-2, rtol=5e-2), "z mismatch"
    assert jnp.allclose(kl, kl_ref, atol=5e-1, rtol=5e-2), "kl mismatch"

    print("KERNEL_OK")
</pallas_src>

<mosaic_0001>
module attributes {stable_mosaic.version = 11 : i64} {
  func.func @_vae_encoder_kernel(%arg0: i32, %arg1: memref<8x896xbf16, #tpu.memory_space<vmem>>, %arg2: memref<896x512xbf16, #tpu.memory_space<vmem>>, %arg3: memref<1x512xf32, #tpu.memory_space<vmem>>, %arg4: memref<512x256xbf16, #tpu.memory_space<vmem>>, %arg5: memref<1x256xf32, #tpu.memory_space<vmem>>, %arg6: memref<8x128xf32, #tpu.memory_space<vmem>>, %arg7: memref<8x128xf32, #tpu.memory_space<vmem>>, %arg8: memref<1x1xf32, #tpu.memory_space<smem>>) attributes {dimension_semantics = [#tpu.dimension_semantics<parallel>], iteration_bounds = array<i64: 1>, scalar_prefetch = 0 : i64, scratch_operands = 0 : i64, tpu.core_type = #tpu.core_type<tc>, window_params = [{transform_indices = @transform_0, window_bounds = array<i64: 8, 896>}, {pipeline_mode = #tpu.pipeline_mode<synchronous>, transform_indices = @transform_1, window_bounds = array<i64: 896, 512>}, {pipeline_mode = #tpu.pipeline_mode<synchronous>, transform_indices = @transform_2, window_bounds = array<i64: 1, 512>}, {pipeline_mode = #tpu.pipeline_mode<synchronous>, transform_indices = @transform_3, window_bounds = array<i64: 512, 256>}, {pipeline_mode = #tpu.pipeline_mode<synchronous>, transform_indices = @transform_4, window_bounds = array<i64: 1, 256>}, {transform_indices = @transform_5, window_bounds = array<i64: 8, 128>}, {transform_indices = @transform_6, window_bounds = array<i64: 8, 128>}, {transform_indices = @transform_7, window_bounds = array<i64: 1, 1>}]} {
    %c0 = arith.constant 0 : index
    %c0_0 = arith.constant 0 : index
    %0 = vector.load %arg1[%c0, %c0_0] : memref<8x896xbf16, #tpu.memory_space<vmem>>, vector<8x896xbf16>
    %c0_1 = arith.constant 0 : index
    %c0_2 = arith.constant 0 : index
    %1 = vector.load %arg2[%c0_1, %c0_2] : memref<896x512xbf16, #tpu.memory_space<vmem>>, vector<896x512xbf16>
    %cst = arith.constant dense<0.000000e+00> : vector<8x512xf32>
    %2 = tpu.matmul %0, %1, %cst {dimension_numbers = #tpu.dot_dimension_numbers<[1], [0], [0], [1], [0, 0, 1, 1], [], []>} : vector<8x896xbf16>, vector<896x512xbf16>, vector<8x512xf32> -> vector<8x512xf32>
    %c0_3 = arith.constant 0 : index
    %c0_4 = arith.constant 0 : index
    %3 = vector.load %arg3[%c0_3, %c0_4] : memref<1x512xf32, #tpu.memory_space<vmem>>, vector<1x512xf32>
    %4 = vector.broadcast %3 : vector<1x512xf32> to vector<8x512xf32>
    %5 = arith.addf %2, %4 : vector<8x512xf32>
    %cst_5 = arith.constant 0.000000e+00 : f32
    %6 = vector.broadcast %cst_5 : f32 to vector<8x512xf32>
    %7 = arith.maximumf %5, %6 : vector<8x512xf32>
    %8 = arith.truncf %7 : vector<8x512xf32> to vector<8x512xbf16>
    %c0_6 = arith.constant 0 : index
    %c0_7 = arith.constant 0 : index
    %9 = vector.load %arg4[%c0_6, %c0_7] : memref<512x256xbf16, #tpu.memory_space<vmem>>, vector<512x256xbf16>
    %cst_8 = arith.constant dense<0.000000e+00> : vector<8x256xf32>
    %10 = tpu.matmul %8, %9, %cst_8 {dimension_numbers = #tpu.dot_dimension_numbers<[1], [0], [0], [1], [0, 0, 1, 1], [], []>} : vector<8x512xbf16>, vector<512x256xbf16>, vector<8x256xf32> -> vector<8x256xf32>
    %c0_9 = arith.constant 0 : index
    %c0_10 = arith.constant 0 : index
    %11 = vector.load %arg5[%c0_9, %c0_10] : memref<1x256xf32, #tpu.memory_space<vmem>>, vector<1x256xf32>
    %12 = vector.broadcast %11 : vector<1x256xf32> to vector<8x256xf32>
    %13 = arith.addf %10, %12 : vector<8x256xf32>
    %14 = vector.extract_strided_slice %13 {offsets = [0, 0], sizes = [8, 128], strides = [1, 1]} : vector<8x256xf32> to vector<8x128xf32>
    %15 = vector.extract_strided_slice %13 {offsets = [0, 128], sizes = [8, 128], strides = [1, 1]} : vector<8x256xf32> to vector<8x128xf32>
    %16 = math.exp %15 : vector<8x128xf32>
    %c0_11 = arith.constant 0 : index
    %c0_12 = arith.constant 0 : index
    %17 = vector.load %arg6[%c0_11, %c0_12] : memref<8x128xf32, #tpu.memory_space<vmem>>, vector<8x128xf32>
    %18 = arith.mulf %16, %17 : vector<8x128xf32>
    %19 = arith.addf %14, %18 : vector<8x128xf32>
    %c0_13 = arith.constant 0 : index
    %c0_14 = arith.constant 0 : index
    %20 = vector.load %arg7[%c0_13, %c0_14] : memref<8x128xf32, #tpu.memory_space<vmem>>, vector<8x128xf32>
    tpu.vector_store %arg7[%c0_13, %c0_14], %19 {strides = array<i32>} : memref<8x128xf32, #tpu.memory_space<vmem>>, vector<8x128xf32>,
    %21 = tpu.iota {dimensions = array<i32: 0>} : vector<8x128xi32>
    %c8_i32 = arith.constant 8 : i32
    %22 = arith.muli %arg0, %c8_i32 : i32
    %23 = vector.broadcast %22 : i32 to vector<8x128xi32>
    %24 = arith.addi %21, %23 : vector<8x128xi32>
    %25 = tpu.iota {dimensions = array<i32: 1>} : vector<8x128xi32>
    %c2_i32 = arith.constant 2 : i32
    %26 = vector.broadcast %c2_i32 : i32 to vector<8x128xi32>
    %27 = arith.cmpi slt, %24, %26 : vector<8x128xi32>
    %c2_i32_15 = arith.constant 2 : i32
    %28 = vector.broadcast %c2_i32_15 : i32 to vector<8x128xi32>
    %29 = arith.cmpi slt, %25, %28 : vector<8x128xi32>
    %30 = arith.andi %27, %29 : vector<8x128xi1>
    %31 = arith.mulf %16, %16 : vector<8x128xf32>
    %32 = arith.mulf %14, %14 : vector<8x128xf32>
    %33 = arith.addf %31, %32 : vector<8x128xf32>
    %34 = arith.subf %33, %15 : vector<8x128xf32>
    %cst_16 = arith.constant 5.000000e-01 : f32
    %35 = vector.broadcast %cst_16 : f32 to vector<8x128xf32>
    %36 = arith.subf %34, %35 : vector<8x128xf32>
    %cst_17 = arith.constant 0.000000e+00 : f32
    %37 = vector.broadcast %cst_17 : f32 to vector<8x128xf32>
    %38 = arith.select %30, %36, %37 : vector<8x128xi1>, vector<8x128xf32>
    %39 = vector.shape_cast %38 : vector<8x128xf32> to vector<1x8x128xf32>
    %cst_18 = arith.constant dense<0.000000e+00> : vector<1xf32>
    %40 = vector.multi_reduction <add>, %39, %cst_18 [1, 2] : vector<1x8x128xf32> to vector<1xf32>
    %41 = vector.shape_cast %40 : vector<1xf32> to vector<1x1x1xf32>
    %42 = vector.extract %41[0, 0, 0] : f32 from vector<1x1x1xf32>
    %c0_19 = arith.constant 0 : index
    %c0_20 = arith.constant 0 : index
    %43 = memref.load %arg8[%c0_19, %c0_20] : memref<1x1xf32, #tpu.memory_space<smem>>
    memref.store %42, %arg8[%c0_19, %c0_20] : memref<1x1xf32, #tpu.memory_space<smem>>
    return
  }
  func.func @transform_0(%arg0: i32) -> (i32, i32) {
    %c0_i32 = arith.constant 0 : i32
    %c0_i32_0 = arith.constant 0 : i32
    return %arg0, %c0_i32 : i32, i32
  }
  func.func @transform_1(%arg0: i32) -> (i32, i32) {
    %c0_i32 = arith.constant 0 : i32
    %c0_i32_0 = arith.constant 0 : i32
    %c0_i32_1 = arith.constant 0 : i32
    return %c0_i32, %c0_i32_0 : i32, i32
  }
  func.func @transform_2(%arg0: i32) -> (i32, i32) {
    %c0_i32 = arith.constant 0 : i32
    %c0_i32_0 = arith.constant 0 : i32
    %c0_i32_1 = arith.constant 0 : i32
    return %c0_i32, %c0_i32_0 : i32, i32
  }
  func.func @transform_3(%arg0: i32) -> (i32, i32) {
    %c0_i32 = arith.constant 0 : i32
    %c0_i32_0 = arith.constant 0 : i32
    %c0_i32_1 = arith.constant 0 : i32
    return %c0_i32, %c0_i32_0 : i32, i32
  }
  func.func @transform_4(%arg0: i32) -> (i32, i32) {
    %c0_i32 = arith.constant 0 : i32
    %c0_i32_0 = arith.constant 0 : i32
    %c0_i32_1 = arith.constant 0 : i32
    return %c0_i32, %c0_i32_0 : i32, i32
  }
  func.func @transform_5(%arg0: i32) -> (i32, i32) {
    %c0_i32 = arith.constant 0 : i32
    %c0_i32_0 = arith.constant 0 : i32
    return %arg0, %c0_i32 : i32, i32
  }
  func.func @transform_6(%arg0: i32) -> (i32, i32) {
    %c0_i32 = arith.constant 0 : i32
    %c0_i32_0 = arith.constant 0 : i32
    return %arg0, %c0_i32 : i32, i32
  }
  func.func @transform_7(%arg0: i32) -> (i32, i32) {
    %c0_i32 = arith.constant 0 : i32
    %c0_i32_0 = arith.constant 0 : i32
    return %arg0, %c0_i32 : i32, i32
  }
}

</mosaic_0001>

<llo_original>
// kernel: tpu_custom_call.1
$region0: #{tpu_custom_call.1}
  #allocation0 [shape = 'u32[]', space=smem, size = 0x4, offset = 0x4, fixed_abs, tag = 'smem constant byte address 0x4 - core index']
  #allocation1 [shape = 'u32[72,128]{1,0:T(1,128)}', space=vmem, size = 0x9000, scoped, tag = 'internal scratch']
  %s0 = inlined_call_operand.hbm [shape: bf16[8,896], index: 0, kind: input, shape index: {}]
  %s1 = inlined_call_operand.hbm [shape: bf16[896,512], index: 1, kind: input, shape index: {}]
  %s2 = inlined_call_operand.hbm [shape: f32[1,512], index: 2, kind: input, shape index: {}]
  %s3 = inlined_call_operand.hbm [shape: bf16[512,256], index: 3, kind: input, shape index: {}]
  %s4 = inlined_call_operand.vmem [shape: f32[1,256], index: 4, kind: input, shape index: {}]
  %s5 = inlined_call_operand.hbm [shape: f32[8,128], index: 5, kind: input, shape index: {}]
  %s6 = inlined_call_operand.hbm [shape: f32[8,128], index: 6, kind: output, shape index: {0}]
  %s7 = inlined_call_operand.hbm [shape: f32[1,1], index: 7, kind: output, shape index: {1}]
  %8 = xla_tuple %s6, %s7
  %s9 = sld [smem:[#allocation0]]
  $region62: #{tpu_custom_call.1} parent=0
    _
  %s11 = ssub.s32 1, %s9
  %s12 = scalar_select 0, %s11, %s9
  $region1: #{tpu_custom_call.1} parent=0
    #allocation2 [shape = 'u8[14336]{0}', space=vmem, size = 0x3800, scoped, tag = 'input window, operand 0, single buffered']
    #allocation3 [shape = 's32[1]{0}', space=sflag, size = 0x4, scoped, tag = 'scoped memory for tpu_custom_call.1']
    #allocation4 [shape = 's32[1]{0}', space=sflag, size = 0x4, scoped, tag = 'scoped memory for tpu_custom_call.1']
    #allocation5 [shape = 's32[1]{0}', space=sflag, size = 0x4, scoped, tag = 'scoped memory for tpu_custom_call.1']
    #allocation6 [shape = 'u8[917504]{0}', space=vmem, size = 0xe0000, scoped, tag = 'input window, operand 1, single buffered']
    #allocation7 [shape = 's32[1]{0}', space=sflag, size = 0x4, scoped, tag = 'scoped memory for tpu_custom_call.1']
    #allocation8 [shape = 'u8[2048]{0}', space=vmem, size = 0x800, scoped, tag = 'input window, operand 2, single buffered']
    #allocation9 [shape = 'u8[262144]{0}', space=vmem, size = 0x40000, scoped, tag = 'input window, operand 3, single buffered']
    #allocation10 [shape = 's32[1]{0}', space=sflag, size = 0x4, scoped, tag = 'scoped memory for tpu_custom_call.1']
    #allocation11 [shape = 'u8[4096]{0}', space=vmem, size = 0x1000, scoped, tag = 'input window, operand 5, single buffered']
    #allocation12 [shape = 'u8[4096]{0}', space=vmem, size = 0x1000, scoped, tag = 'output window, operand 0, single buffered']
    #allocation13 [shape = 'u8[512]{0}', space=smem, size = 0x200, scoped, tag = 'output window, operand 1, single buffered']
    %13 = vsyncpa [#allocation3], 0
    %14 = vsyncpa [#allocation7], 0
    %15 = vsyncpa [#allocation10], 0
    %16 = vsyncpa [#allocation4], 0
    %17 = vsyncpa [#allocation5], 0
    // Predicated region
    $region2: #{tpu_custom_call.1} parent=1 // pred_check
      _
    $region3: #{tpu_custom_call.1} parent=1 // pred_check_branch
      %19 = sbr.rel (0) target = $region5
    $region4: #{tpu_custom_call.1} parent=1 // pred_region
      %21 = vsyncadd [#allocation3], 0
      %s23 = sshll.u32 %s0, 4
      %s24 = int_to_ptr.hbm [resolvable:$true] %s23
      %s25 = sshll.u32 [#allocation2], 4
      %s26 = int_to_ptr.vmem [resolvable:$true] %s25
      %28 = dma.hbm_to_vmem [thread:$0]  %s24, 448, %s26, [#allocation3]
    $region5: #{tpu_custom_call.1} parent=1 // pred_fallthru
      _
    // Predicated region
    $region6: #{tpu_custom_call.1} parent=1 // pred_check
      _
    $region7: #{tpu_custom_call.1} parent=1 // pred_check_branch
      %30 = sbr.rel (0) target = $region9
    $region8: #{tpu_custom_call.1} parent=1 // pred_region
      %32 = vsyncadd [#allocation7], 0
      %s33 = sshll.u32 %s1, 4
      %s34 = int_to_ptr.hbm [resolvable:$true] %s33
      %s35 = sshll.u32 [#allocation6], 4
      %s36 = int_to_ptr.vmem [resolvable:$true] %s35
      %41 = dma.hbm_to_vmem [thread:$0]  %s34, 28672, %s36, [#allocation7], 256, 256, 16
    $region9: #{tpu_custom_call.1} parent=1 // pred_fallthru
      _
    // Predicated region
    $region10: #{tpu_custom_call.1} parent=1 // pred_check
      _
    $region11: #{tpu_custom_call.1} parent=1 // pred_check_branch
      %43 = sbr.rel (0) target = $region13
    $region12: #{tpu_custom_call.1} parent=1 // pred_region
      %45 = vsyncadd [#allocation7], 0
      %s47 = sshll.u32 %s2, 4
      %s48 = int_to_ptr.hbm [resolvable:$true] %s47
      %s49 = sshll.u32 [#allocation8], 4
      %s50 = int_to_ptr.vmem [resolvable:$true] %s49
      %52 = dma.hbm_to_vmem [thread:$0]  %s48, 64, %s50, [#allocation7]
    $region13: #{tpu_custom_call.1} parent=1 // pred_fallthru
      _
    // Predicated region
    $region14: #{tpu_custom_call.1} parent=1 // pred_check
      _
    $region15: #{tpu_custom_call.1} parent=1 // pred_check_branch
      %54 = sbr.rel (0) target = $region17
    $region16: #{tpu_custom_call.1} parent=1 // pred_region
      %56 = vsyncadd [#allocation10], 0
      %s57 = sshll.u32 %s3, 4
      %s58 = int_to_ptr.hbm [resolvable:$true] %s57
      %s59 = sshll.u32 [#allocation9], 4
      %s60 = int_to_ptr.vmem [resolvable:$true] %s59
      %65 = dma.hbm_to_vmem [thread:$0]  %s58, 8192, %s60, [#allocation10], 128, 128, 8
    $region17: #{tpu_custom_call.1} parent=1 // pred_fallthru
      _
    // Predicated region
    $region18: #{tpu_custom_call.1} parent=1 // pred_check
      _
    $region19: #{tpu_custom_call.1} parent=1 // pred_check_branch
      %67 = sbr.rel (0) target = $region21
    $region20: #{tpu_custom_call.1} parent=1 // pred_region
      _
    $region21: #{tpu_custom_call.1} parent=1 // pred_fallthru
      _
    // Predicated region
    $region22: #{tpu_custom_call.1} parent=1 // pred_check
      _
    $region23: #{tpu_custom_call.1} parent=1 // pred_check_branch
      %69 = sbr.rel (0) target = $region25
    $region24: #{tpu_custom_call.1} parent=1 // pred_region
      %71 = vsyncadd [#allocation10], 0
      %s73 = sshll.u32 %s5, 4
      %s74 = int_to_ptr.hbm [resolvable:$true] %s73
      %s75 = sshll.u32 [#allocation11], 4
      %s76 = int_to_ptr.vmem [resolvable:$true] %s75
      %78 = dma.hbm_to_vmem [thread:$0]  %s74, 128, %s76, [#allocation10]
    $region25: #{tpu_custom_call.1} parent=1 // pred_fallthru
      _
    // Predicated region
    $region26: #{tpu_custom_call.1} parent=1 // pred_check
      _
    $region27: #{tpu_custom_call.1} parent=1 // pred_check_branch
      %80 = sbr.rel (0) target = $region29
    $region28: #{tpu_custom_call.1} parent=1 // pred_region
      %82 = dma.done [#allocation3], 448
    $region29: #{tpu_custom_call.1} parent=1 // pred_fallthru
      _
    // Predicated region
    $region30: #{tpu_custom_call.1} parent=1 // pred_check
      _
    $region31: #{tpu_custom_call.1} parent=1 // pred_check_branch
      %84 = sbr.rel (0) target = $region33
    $region32: #{tpu_custom_call.1} parent=1 // pred_region
      %86 = dma.done [#allocation7], 28672
    $region33: #{tpu_custom_call.1} parent=1 // pred_fallthru
      _
    // Predicated region
    $region34: #{tpu_custom_call.1} parent=1 // pred_check
      _
    $region35: #{tpu_custom_call.1} parent=1 // pred_check_branch
      %88 = sbr.rel (0) target = $region37
    $region36: #{tpu_custom_call.1} parent=1 // pred_region
      %90 = dma.done [#allocation7], 64
    $region37: #{tpu_custom_call.1} parent=1 // pred_fallthru
      _
    // Predicated region
    $region38: #{tpu_custom_call.1} parent=1 // pred_check
      _
    $region39: #{tpu_custom_call.1} parent=1 // pred_check_branch
      %92 = sbr.rel (0) target = $region41
    $region40: #{tpu_custom_call.1} parent=1 // pred_region
      %94 = dma.done [#allocation10], 8192
    $region41: #{tpu_custom_call.1} parent=1 // pred_fallthru
      _
    // Predicated region
    $region42: #{tpu_custom_call.1} parent=1 // pred_check
      _
    $region43: #{tpu_custom_call.1} parent=1 // pred_check_branch
      %96 = sbr.rel (0) target = $region45
    $region44: #{tpu_custom_call.1} parent=1 // pred_region
      %98 = dma.done [#allocation10], 128
    $region45: #{tpu_custom_call.1} parent=1 // pred_fallthru
      _
    %v99 = vld [vmem:[#allocation2] sm:$0xff]
    %v100 = vld [vmem:[#allocation2 + $0x8] sm:$0xff]
    %v101 = vld [vmem:[#allocation2 + $0x10] sm:$0xff]
    %v102 = vld [vmem:[#allocation2 + $0x18] sm:$0xf]
    %v103 = vld [vmem:[#allocation6] sm:$0xff]
    %v104 = vld [vmem:[#allocation6 + $0x8] sm:$0xff]
    %v105 = vld [vmem:[#allocation6 + $0x10] sm:$0xff]
    %v106 = vld [vmem:[#allocation6 + $0x18] sm:$0xff]
    %v107 = vld [vmem:[#allocation6 + $0x20] sm:$0xff]
    %v108 = vld [vmem:[#allocation6 + $0x28] sm:$0xff]
    %v109 = vld [vmem:[#allocation6 + $0x30] sm:$0xff]
    %v110 = vld [vmem:[#allocation6 + $0x38] sm:$0xff]
    %v111 = vld [vmem:[#allocation6 + $0x40] sm:$0xff]
    %v112 = vld [vmem:[#allocation6 + $0x48] sm:$0xff]
    %v113 = vld [vmem:[#allocation6 + $0x50] sm:$0xff]
    %v114 = vld [vmem:[#allocation6 + $0x58] sm:$0xff]
    %v115 = vld [vmem:[#allocation6 + $0x60] sm:$0xff]
    %v116 = vld [vmem:[#allocation6 + $0x68] sm:$0xff]
    %v117 = vld [vmem:[#allocation6 + $0x70] sm:$0xff]
    %v118 = vld [vmem:[#allocation6 + $0x78] sm:$0xff]
    %v119 = vld [vmem:[#allocation6 + $0x80] sm:$0xff]
    %v120 = vld [vmem:[#allocation6 + $0x88] sm:$0xff]
    %v121 = vld [vmem:[#allocation6 + $0x90] sm:$0xff]
    %v122 = vld [vmem:[#allocation6 + $0x98] sm:$0xff]
    %v123 = vld [vmem:[#allocation6 + $0xa0] sm:$0xff]
    %v124 = vld [vmem:[#allocation6 + $0xa8] sm:$0xff]
    %v125 = vld [vmem:[#allocation6 + $0xb0] sm:$0xff]
    %v126 = vld [vmem:[#allocation6 + $0xb8] sm:$0xff]
    %v127 = vld [vmem:[#allocation6 + $0xc0] sm:$0xff]
    %v128 = vld [vmem:[#allocation6 + $0xc8] sm:$0xff]
    %v129 = vld [vmem:[#allocation6 + $0xd0] sm:$0xff]
    %v130 = vld [vmem:[#allocation6 + $0xd8] sm:$0xff]
    %v131 = vld [vmem:[#allocation6 + $0xe0] sm:$0xff]
    %v132 = vld [vmem:[#allocation6 + $0xe8] sm:$0xff]
    %v133 = vld [vmem:[#allocation6 + $0xf0] sm:$0xff]
    %v134 = vld [vmem:[#allocation6 + $0xf8] sm:$0xff]
    %v135 = vld [vmem:[#allocation6 + $0x100] sm:$0xff]
    %v136 = vld [vmem:[#allocation6 + $0x108] sm:$0xff]
    %v137 = vld [vmem:[#allocation6 + $0x110] sm:$0xff]
    %v138 = vld [vmem:[#allocation6 + $0x118] sm:$0xff]
    %v139 = vld [vmem:[#allocation6 + $0x120] sm:$0xff]
    %v140 = vld [vmem:[#allocation6 + $0x128] sm:$0xff]
    %v141 = vld [vmem:[#allocation6 + $0x130] sm:$0xff]
    %v142 = vld [vmem:[#allocation6 + $0x138] sm:$0xff]
    %v143 = vld [vmem:[#allocation6 + $0x140] sm:$0xff]
    %v144 = vld [vmem:[#allocation6 + $0x148] sm:$0xff]
    %v145 = vld [vmem:[#allocation6 + $0x150] sm:$0xff]
    %v146 = vld [vmem:[#allocation6 + $0x158] sm:$0xff]
    %v147 = vld [vmem:[#allocation6 + $0x160] sm:$0xff]
    %v148 = vld [vmem:[#allocation6 + $0x168] sm:$0xff]
    %v149 = vld [vmem:[#allocation6 + $0x170] sm:$0xff]
    %v150 = vld [vmem:[#allocation6 + $0x178] sm:$0xff]
    %v151 = vld [vmem:[#allocation6 + $0x180] sm:$0xff]
    %v152 = vld [vmem:[#allocation6 + $0x188] sm:$0xff]
    %v153 = vld [vmem:[#allocation6 + $0x190] sm:$0xff]
    %v154 = vld [vmem:[#allocation6 + $0x198] sm:$0xff]
    %v155 = vld [vmem:[#allocation6 + $0x1a0] sm:$0xff]
    %v156 = vld [vmem:[#allocation6 + $0x1a8] sm:$0xff]
    %v157 = vld [vmem:[#allocation6 + $0x1b0] sm:$0xff]
    %v158 = vld [vmem:[#allocation6 + $0x1b8] sm:$0xff]
    %v159 = vld [vmem:[#allocation6 + $0x1c0] sm:$0xff]
    %v160 = vld [vmem:[#allocation6 + $0x1c8] sm:$0xff]
    %v161 = vld [vmem:[#allocation6 + $0x1d0] sm:$0xff]
    %v162 = vld [vmem:[#allocation6 + $0x1d8] sm:$0xff]
    %v163 = vld [vmem:[#allocation6 + $0x1e0] sm:$0xff]
    %v164 = vld [vmem:[#allocation6 + $0x1e8] sm:$0xff]
    %v165 = vld [vmem:[#allocation6 + $0x1f0] sm:$0xff]
    %v166 = vld [vmem:[#allocation6 + $0x1f8] sm:$0xff]
    %v167 = vld [vmem:[#allocation6 + $0x200] sm:$0xff]
    %v168 = vld [vmem:[#allocation6 + $0x208] sm:$0xff]
    %v169 = vld [vmem:[#allocation6 + $0x210] sm:$0xff]
    %v170 = vld [vmem:[#allocation6 + $0x218] sm:$0xff]
    %v171 = vld [vmem:[#allocation6 + $0x220] sm:$0xff]
    %v172 = vld [vmem:[#allocation6 + $0x228] sm:$0xff]
    %v173 = vld [vmem:[#allocation6 + $0x230] sm:$0xff]
    %v174 = vld [vmem:[#allocation6 + $0x238] sm:$0xff]
    %v175 = vld [vmem:[#allocation6 + $0x240] sm:$0xff]
    %v176 = vld [vmem:[#allocation6 + $0x248] sm:$0xff]
    %v177 = vld [vmem:[#allocation6 + $0x250] sm:$0xff]
    %v178 = vld [vmem:[#allocation6 + $0x258] sm:$0xff]
    %v179 = vld [vmem:[#allocation6 + $0x260] sm:$0xff]
    %v180 = vld [vmem:[#allocation6 + $0x268] sm:$0xff]
    %v181 = vld [vmem:[#allocation6 + $0x270] sm:$0xff]
    %v182 = vld [vmem:[#allocation6 + $0x278] sm:$0xff]
    %v183 = vld [vmem:[#allocation6 + $0x280] sm:$0xff]
    %v184 = vld [vmem:[#allocation6 + $0x288] sm:$0xff]
    %v185 = vld [vmem:[#allocation6 + $0x290] sm:$0xff]
    %v186 = vld [vmem:[#allocation6 + $0x298] sm:$0xff]
    %v187 = vld [vmem:[#allocation6 + $0x2a0] sm:$0xff]
    %v188 = vld [vmem:[#allocation6 + $0x2a8] sm:$0xff]
    %v189 = vld [vmem:[#allocation6 + $0x2b0] sm:$0xff]
    %v190 = vld [vmem:[#allocation6 + $0x2b8] sm:$0xff]
    %v191 = vld [vmem:[#allocation6 + $0x2c0] sm:$0xff]
    %v192 = vld [vmem:[#allocation6 + $0x2c8] sm:$0xff]
    %v193 = vld [vmem:[#allocation6 + $0x2d0] sm:$0xff]
    %v194 = vld [vmem:[#allocation6 + $0x2d8] sm:$0xff]
    %v195 = vld [vmem:[#allocation6 + $0x2e0] sm:$0xff]
    %v196 = vld [vmem:[#allocation6 + $0x2e8] sm:$0xff]
    %v197 = vld [vmem:[#allocation6 + $0x2f0] sm:$0xff]
    %v198 = vld [vmem:[#allocation6 + $0x2f8] sm:$0xff]
    %v199 = vld [vmem:[#allocation6 + $0x300] sm:$0xff]
    %v200 = vld [vmem:[#allocation6 + $0x308] sm:$0xff]
    %v201 = vld [vmem:[#allocation6 + $0x310] sm:$0xff]
    %v202 = vld [vmem:[#allocation6 + $0x318] sm:$0xff]
    %v203 = vld [vmem:[#allocation6 + $0x320] sm:$0xff]
    %v204 = vld [vmem:[#allocation6 + $0x328] sm:$0xff]
    %v205 = vld [vmem:[#allocation6 + $0x330] sm:$0xff]
    %v206 = vld [vmem:[#allocation6 + $0x338] sm:$0xff]
    %v207 = vld [vmem:[#allocation6 + $0x340] sm:$0xff]
    %v208 = vld [vmem:[#allocation6 + $0x348] sm:$0xff]
    %v209 = vld [vmem:[#allocation6 + $0x350] sm:$0xff]
    %v210 = vld [vmem:[#allocation6 + $0x358] sm:$0xff]
    %v211 = vld [vmem:[#allocation6 + $0x360] sm:$0xff]
    %v212 = vld [vmem:[#allocation6 + $0x368] sm:$0xff]
    %v213 = vld [vmem:[#allocation6 + $0x370] sm:$0xff]
    %v214 = vld [vmem:[#allocation6 + $0x378] sm:$0xff]
    %v215 = vld [vmem:[#allocation6 + $0x380] sm:$0xff]
    %v216 = vld [vmem:[#allocation6 + $0x388] sm:$0xff]
    %v217 = vld [vmem:[#allocation6 + $0x390] sm:$0xff]
    %v218 = vld [vmem:[#allocation6 + $0x398] sm:$0xff]
    %v219 = vld [vmem:[#allocation6 + $0x3a0] sm:$0xff]
    %v220 = vld [vmem:[#allocation6 + $0x3a8] sm:$0xff]
    %v221 = vld [vmem:[#allocation6 + $0x3b0] sm:$0xff]
    %v222 = vld [vmem:[#allocation6 + $0x3b8] sm:$0xff]
    %v223 = vld [vmem:[#allocation6 + $0x3c0] sm:$0xff]
    %v224 = vld [vmem:[#allocation6 + $0x3c8] sm:$0xff]
    %v225 = vld [vmem:[#allocation6 + $0x3d0] sm:$0xff]
    %v226 = vld [vmem:[#allocation6 + $0x3d8] sm:$0xff]
    %v227 = vld [vmem:[#allocation6 + $0x3e0] sm:$0xff]
    %v228 = vld [vmem:[#allocation6 + $0x3e8] sm:$0xff]
    %v229 = vld [vmem:[#allocation6 + $0x3f0] sm:$0xff]
    %v230 = vld [vmem:[#allocation6 + $0x3f8] sm:$0xff]
    %v231 = vld [vmem:[#allocation6 + $0x400] sm:$0xff]
    %v232 = vld [vmem:[#allocation6 + $0x408] sm:$0xff]
    %v233 = vld [vmem:[#allocation6 + $0x410] sm:$0xff]
    %v234 = vld [vmem:[#allocation6 + $0x418] sm:$0xff]
    %v235 = vld [vmem:[#allocation6 + $0x420] sm:$0xff]
    %v236 = vld [vmem:[#allocation6 + $0x428] sm:$0xff]
    %v237 = vld [vmem:[#allocation6 + $0x430] sm:$0xff]
    %v238 = vld [vmem:[#allocation6 + $0x438] sm:$0xff]
    %v239 = vld [vmem:[#allocation6 + $0x440] sm:$0xff]
    %v240 = vld [vmem:[#allocation6 + $0x448] sm:$0xff]
    %v241 = vld [vmem:[#allocation6 + $0x450] sm:$0xff]
    %v242 = vld [vmem:[#allocation6 + $0x458] sm:$0xff]
    %v243 = vld [vmem:[#allocation6 + $0x460] sm:$0xff]
    %v244 = vld [vmem:[#allocation6 + $0x468] sm:$0xff]
    %v245 = vld [vmem:[#allocation6 + $0x470] sm:$0xff]
    %v246 = vld [vmem:[#allocation6 + $0x478] sm:$0xff]
    %v247 = vld [vmem:[#allocation6 + $0x480] sm:$0xff]
    %v248 = vld [vmem:[#allocation6 + $0x488] sm:$0xff]
    %v249 = vld [vmem:[#allocation6 + $0x490] sm:$0xff]
    %v250 = vld [vmem:[#allocation6 + $0x498] sm:$0xff]
    %v251 = vld [vmem:[#allocation6 + $0x4a0] sm:$0xff]
    %v252 = vld [vmem:[#allocation6 + $0x4a8] sm:$0xff]
    %v253 = vld [vmem:[#allocation6 + $0x4b0] sm:$0xff]
    %v254 = vld [vmem:[#allocation6 + $0x4b8] sm:$0xff]
    %v255 = vld [vmem:[#allocation6 + $0x4c0] sm:$0xff]
    %v256 = vld [vmem:[#allocation6 + $0x4c8] sm:$0xff]
    %v257 = vld [vmem:[#allocation6 + $0x4d0] sm:$0xff]
    %v258 = vld [vmem:[#allocation6 + $0x4d8] sm:$0xff]
    %v259 = vld [vmem:[#allocation6 + $0x4e0] sm:$0xff]
    %v260 = vld [vmem:[#allocation6 + $0x4e8] sm:$0xff]
    %v261 = vld [vmem:[#allocation6 + $0x4f0] sm:$0xff]
    %v262 = vld [vmem:[#allocation6 + $0x4f8] sm:$0xff]
    %v263 = vld [vmem:[#allocation6 + $0x500] sm:$0xff]
    %v264 = vld [vmem:[#allocation6 + $0x508] sm:$0xff]
    %v265 = vld [vmem:[#allocation6 + $0x510] sm:$0xff]
    %v266 = vld [vmem:[#allocation6 + $0x518] sm:$0xff]
    %v267 = vld [vmem:[#allocation6 + $0x520] sm:$0xff]
    %v268 = vld [vmem:[#allocation6 + $0x528] sm:$0xff]
    %v269 = vld [vmem:[#allocation6 + $0x530] sm:$0xff]
    %v270 = vld [vmem:[#allocation6 + $0x538] sm:$0xff]
    %v271 = vld [vmem:[#allocation6 + $0x540] sm:$0xff]
    %v272 = vld [vmem:[#allocation6 + $0x548] sm:$0xff]
    %v273 = vld [vmem:[#allocation6 + $0x550] sm:$0xff]
    %v274 = vld [vmem:[#allocation6 + $0x558] sm:$0xff]
    %v275 = vld [vmem:[#allocation6 + $0x560] sm:$0xff]
    %v276 = vld [vmem:[#allocation6 + $0x568] sm:$0xff]
    %v277 = vld [vmem:[#allocation6 + $0x570] sm:$0xff]
    %v278 = vld [vmem:[#allocation6 + $0x578] sm:$0xff]
    %v279 = vld [vmem:[#allocation6 + $0x580] sm:$0xff]
    %v280 = vld [vmem:[#allocation6 + $0x588] sm:$0xff]
    %v281 = vld [vmem:[#allocation6 + $0x590] sm:$0xff]
    %v282 = vld [vmem:[#allocation6 + $0x598] sm:$0xff]
    %v283 = vld [vmem:[#allocation6 + $0x5a0] sm:$0xff]
    %v284 = vld [vmem:[#allocation6 + $0x5a8] sm:$0xff]
    %v285 = vld [vmem:[#allocation6 + $0x5b0] sm:$0xff]
    %v286 = vld [vmem:[#allocation6 + $0x5b8] sm:$0xff]
    %v287 = vld [vmem:[#allocation6 + $0x5c0] sm:$0xff]
    %v288 = vld [vmem:[#allocation6 + $0x5c8] sm:$0xff]
    %v289 = vld [vmem:[#allocation6 + $0x5d0] sm:$0xff]
    %v290 = vld [vmem:[#allocation6 + $0x5d8] sm:$0xff]
    %v291 = vld [vmem:[#allocation6 + $0x5e0] sm:$0xff]
    %v292 = vld [vmem:[#allocation6 + $0x5e8] sm:$0xff]
    %v293 = vld [vmem:[#allocation6 + $0x5f0] sm:$0xff]
    %v294 = vld [vmem:[#allocation6 + $0x5f8] sm:$0xff]
    %v295 = vld [vmem:[#allocation6 + $0x600] sm:$0xff]
    %v296 = vld [vmem:[#allocation6 + $0x608] sm:$0xff]
    %v297 = vld [vmem:[#allocation6 + $0x610] sm:$0xff]
    %v298 = vld [vmem:[#allocation6 + $0x618] sm:$0xff]
    %v299 = vld [vmem:[#allocation6 + $0x620] sm:$0xff]
    %v300 = vld [vmem:[#allocation6 + $0x628] sm:$0xff]
    %v301 = vld [vmem:[#allocation6 + $0x630] sm:$0xff]
    %v302 = vld [vmem:[#allocation6 + $0x638] sm:$0xff]
    %v303 = vld [vmem:[#allocation6 + $0x640] sm:$0xff]
    %v304 = vld [vmem:[#allocation6 + $0x648] sm:$0xff]
    %v305 = vld [vmem:[#allocation6 + $0x650] sm:$0xff]
    %v306 = vld [vmem:[#allocation6 + $0x658] sm:$0xff]
    %v307 = vld [vmem:[#allocation6 + $0x660] sm:$0xff]
    %v308 = vld [vmem:[#allocation6 + $0x668] sm:$0xff]
    %v309 = vld [vmem:[#allocation6 + $0x670] sm:$0xff]
    %v310 = vld [vmem:[#allocation6 + $0x678] sm:$0xff]
    %v311 = vld [vmem:[#allocation6 + $0x680] sm:$0xff]
    %v312 = vld [vmem:[#allocation6 + $0x688] sm:$0xff]
    %v313 = vld [vmem:[#allocation6 + $0x690] sm:$0xff]
    %v314 = vld [vmem:[#allocation6 + $0x698] sm:$0xff]
    %v315 = vld [vmem:[#allocation6 + $0x6a0] sm:$0xff]
    %v316 = vld [vmem:[#allocation6 + $0x6a8] sm:$0xff]
    %v317 = vld [vmem:[#allocation6 + $0x6b0] sm:$0xff]
    %v318 = vld [vmem:[#allocation6 + $0x6b8] sm:$0xff]
    %v319 = vld [vmem:[#allocation6 + $0x6c0] sm:$0xff]
    %v320 = vld [vmem:[#allocation6 + $0x6c8] sm:$0xff]
    %v321 = vld [vmem:[#allocation6 + $0x6d0] sm:$0xff]
    %v322 = vld [vmem:[#allocation6 + $0x6d8] sm:$0xff]
    %v323 = vld [vmem:[#allocation6 + $0x6e0] sm:$0xff]
    %v324 = vld [vmem:[#allocation6 + $0x6e8] sm:$0xff]
    %v325 = vld [vmem:[#allocation6 + $0x6f0] sm:$0xff]
    %v326 = vld [vmem:[#allocation6 + $0x6f8] sm:$0xff]
    %v327 = vld [vmem:[#allocation8] sm:$0xf]
    %v329 = vperm.slane %v327, 0
    %v330 = vperm.slane %v327, 1
    %v331 = vperm.slane %v327, 2
    %v332 = vperm.slane %v327, 3
    %v341 = vunpack.c.l.b16 %v99
    %v342 = vunpack.c.h.b16 %v99
    %v343 = vunpack.c.l.b16 %v100
    %v344 = vunpack.c.h.b16 %v100
    %v345 = vunpack.c.l.b16 %v101
    %v346 = vunpack.c.h.b16 %v101
    %v347 = vunpack.c.l.b16 %v102
    %v348 = vpack.c.b16 %v341, %v341
    %v349 = vpack.c.b16 %v342, %v342
    %v350 = vpack.c.b16 %v343, %v343
    %v351 = vpack.c.b16 %v344, %v344
    %v352 = vpack.c.b16 %v345, %v345
    %v353 = vpack.c.b16 %v346, %v346
    %v354 = vpack.c.b16 %v347, %v347
    %v586 = vunpack.c.l.b16 %v103
    %v587 = vunpack.c.h.b16 %v103
    %v588 = vunpack.c.l.b16 %v104
    %v589 = vunpack.c.h.b16 %v104
    %v590 = vunpack.c.l.b16 %v105
    %v591 = vunpack.c.h.b16 %v105
    %v592 = vunpack.c.l.b16 %v106
    %v593 = vunpack.c.h.b16 %v106
    %v594 = vunpack.c.l.b16 %v107
    %v595 = vunpack.c.h.b16 %v107
    %v596 = vunpack.c.l.b16 %v108
    %v597 = vunpack.c.h.b16 %v108
    %v598 = vunpack.c.l.b16 %v109
    %v599 = vunpack.c.h.b16 %v109
    %v600 = vunpack.c.l.b16 %v110
    %v601 = vunpack.c.h.b16 %v110
    %v602 = vunpack.c.l.b16 %v111
    %v603 = vunpack.c.h.b16 %v111
    %v604 = vunpack.c.l.b16 %v112
    %v605 = vunpack.c.h.b16 %v112
    %v606 = vunpack.c.l.b16 %v113
    %v607 = vunpack.c.h.b16 %v113
    %v608 = vunpack.c.l.b16 %v114
    %v609 = vunpack.c.h.b16 %v114
    %v610 = vunpack.c.l.b16 %v115
    %v611 = vunpack.c.h.b16 %v115
    %v612 = vunpack.c.l.b16 %v116
    %v613 = vunpack.c.h.b16 %v116
    %v614 = vunpack.c.l.b16 %v117
    %v615 = vunpack.c.h.b16 %v117
    %v616 = vunpack.c.l.b16 %v118
    %v617 = vunpack.c.h.b16 %v118
    %v618 = vunpack.c.l.b16 %v119
    %v619 = vunpack.c.h.b16 %v119
    %v620 = vunpack.c.l.b16 %v120
    %v621 = vunpack.c.h.b16 %v120
    %v622 = vunpack.c.l.b16 %v121
    %v623 = vunpack.c.h.b16 %v121
    %v624 = vunpack.c.l.b16 %v122
    %v625 = vunpack.c.h.b16 %v122
    %v626 = vunpack.c.l.b16 %v123
    %v627 = vunpack.c.h.b16 %v123
    %v628 = vunpack.c.l.b16 %v124
    %v629 = vunpack.c.h.b16 %v124
    %v630 = vunpack.c.l.b16 %v125
    %v631 = vunpack.c.h.b16 %v125
    %v632 = vunpack.c.l.b16 %v126
    %v633 = vunpack.c.h.b16 %v126
    %v634 = vunpack.c.l.b16 %v127
    %v635 = vunpack.c.h.b16 %v127
    %v636 = vunpack.c.l.b16 %v128
    %v637 = vunpack.c.h.b16 %v128
    %v638 = vunpack.c.l.b16 %v129
    %v639 = vunpack.c.h.b16 %v129
    %v640 = vunpack.c.l.b16 %v130
    %v641 = vunpack.c.h.b16 %v130
    %v642 = vunpack.c.l.b16 %v131
    %v643 = vunpack.c.h.b16 %v131
    %v644 = vunpack.c.l.b16 %v132
    %v645 = vunpack.c.h.b16 %v132
    %v646 = vunpack.c.l.b16 %v133
    %v647 = vunpack.c.h.b16 %v133
    %v648 = vunpack.c.l.b16 %v134
    %v649 = vunpack.c.h.b16 %v134
    %v650 = vunpack.c.l.b16 %v135
    %v651 = vunpack.c.h.b16 %v135
    %v652 = vunpack.c.l.b16 %v136
    %v653 = vunpack.c.h.b16 %v136
    %v654 = vunpack.c.l.b16 %v137
    %v655 = vunpack.c.h.b16 %v137
    %v656 = vunpack.c.l.b16 %v138
    %v657 = vunpack.c.h.b16 %v138
    %v658 = vunpack.c.l.b16 %v139
    %v659 = vunpack.c.h.b16 %v139
    %v660 = vunpack.c.l.b16 %v140
    %v661 = vunpack.c.h.b16 %v140
    %v662 = vunpack.c.l.b16 %v141
    %v663 = vunpack.c.h.b16 %v141
    %v664 = vunpack.c.l.b16 %v142
    %v665 = vunpack.c.h.b16 %v142
    %v666 = vunpack.c.l.b16 %v143
    %v667 = vunpack.c.h.b16 %v143
    %v668 = vunpack.c.l.b16 %v144
    %v669 = vunpack.c.h.b16 %v144
    %v670 = vunpack.c.l.b16 %v145
    %v671 = vunpack.c.h.b16 %v145
    %v672 = vunpack.c.l.b16 %v146
    %v673 = vunpack.c.h.b16 %v146
    %v674 = vunpack.c.l.b16 %v147
    %v675 = vunpack.c.h.b16 %v147
    %v676 = vunpack.c.l.b16 %v148
    %v677 = vunpack.c.h.b16 %v148
    %v678 = vunpack.c.l.b16 %v149
    %v679 = vunpack.c.h.b16 %v149
    %v680 = vunpack.c.l.b16 %v150
    %v681 = vunpack.c.h.b16 %v150
    %v682 = vunpack.c.l.b16 %v151
    %v683 = vunpack.c.h.b16 %v151
    %v684 = vunpack.c.l.b16 %v152
    %v685 = vunpack.c.h.b16 %v152
    %v686 = vunpack.c.l.b16 %v153
    %v687 = vunpack.c.h.b16 %v153
    %v688 = vunpack.c.l.b16 %v154
    %v689 = vunpack.c.h.b16 %v154
    %v690 = vunpack.c.l.b16 %v155
    %v691 = vunpack.c.h.b16 %v155
    %v692 = vunpack.c.l.b16 %v156
    %v693 = vunpack.c.h.b16 %v156
    %v694 = vunpack.c.l.b16 %v157
    %v695 = vunpack.c.h.b16 %v157
    %v696 = vunpack.c.l.b16 %v158
    %v697 = vunpack.c.h.b16 %v158
    %v698 = vunpack.c.l.b16 %v159
    %v699 = vunpack.c.h.b16 %v159
    %v700 = vunpack.c.l.b16 %v160
    %v701 = vunpack.c.h.b16 %v160
    %v702 = vunpack.c.l.b16 %v161
    %v703 = vunpack.c.h.b16 %v161
    %v704 = vunpack.c.l.b16 %v162
    %v705 = vunpack.c.h.b16 %v162
    %v706 = vunpack.c.l.b16 %v163
    %v707 = vunpack.c.h.b16 %v163
    %v708 = vunpack.c.l.b16 %v164
    %v709 = vunpack.c.h.b16 %v164
    %v710 = vunpack.c.l.b16 %v165
    %v711 = vunpack.c.h.b16 %v165
    %v712 = vunpack.c.l.b16 %v166
    %v713 = vunpack.c.h.b16 %v166
    %v714 = vunpack.c.l.b16 %v167
    %v715 = vunpack.c.h.b16 %v167
    %v716 = vunpack.c.l.b16 %v168
    %v717 = vunpack.c.h.b16 %v168
    %v718 = vunpack.c.l.b16 %v169
    %v719 = vunpack.c.h.b16 %v169
    %v720 = vunpack.c.l.b16 %v170
    %v721 = vunpack.c.h.b16 %v170
    %v722 = vunpack.c.l.b16 %v171
    %v723 = vunpack.c.h.b16 %v171
    %v724 = vunpack.c.l.b16 %v172
    %v725 = vunpack.c.h.b16 %v172
    %v726 = vunpack.c.l.b16 %v173
    %v727 = vunpack.c.h.b16 %v173
    %v728 = vunpack.c.l.b16 %v174
    %v729 = vunpack.c.h.b16 %v174
    %v730 = vunpack.c.l.b16 %v175
    %v731 = vunpack.c.h.b16 %v175
    %v732 = vunpack.c.l.b16 %v176
    %v733 = vunpack.c.h.b16 %v176
    %v734 = vunpack.c.l.b16 %v177
    %v735 = vunpack.c.h.b16 %v177
    %v736 = vunpack.c.l.b16 %v178
    %v737 = vunpack.c.h.b16 %v178
    %v738 = vunpack.c.l.b16 %v179
    %v739 = vunpack.c.h.b16 %v179
    %v740 = vunpack.c.l.b16 %v180
    %v741 = vunpack.c.h.b16 %v180
    %v742 = vunpack.c.l.b16 %v181
    %v743 = vunpack.c.h.b16 %v181
    %v744 = vunpack.c.l.b16 %v182
    %v745 = vunpack.c.h.b16 %v182
    %v746 = vunpack.c.l.b16 %v183
    %v747 = vunpack.c.h.b16 %v183
    %v748 = vunpack.c.l.b16 %v184
    %v749 = vunpack.c.h.b16 %v184
    %v750 = vunpack.c.l.b16 %v185
    %v751 = vunpack.c.h.b16 %v185
    %v752 = vunpack.c.l.b16 %v186
    %v753 = vunpack.c.h.b16 %v186
    %v754 = vunpack.c.l.b16 %v187
    %v755 = vunpack.c.h.b16 %v187
    %v756 = vunpack.c.l.b16 %v188
    %v757 = vunpack.c.h.b16 %v188
    %v758 = vunpack.c.l.b16 %v189
    %v759 = vunpack.c.h.b16 %v189
    %v760 = vunpack.c.l.b16 %v190
    %v761 = vunpack.c.h.b16 %v190
    %v762 = vunpack.c.l.b16 %v191
    %v763 = vunpack.c.h.b16 %v191
    %v764 = vunpack.c.l.b16 %v192
    %v765 = vunpack.c.h.b16 %v192
    %v766 = vunpack.c.l.b16 %v193
    %v767 = vunpack.c.h.b16 %v193
    %v768 = vunpack.c.l.b16 %v194
    %v769 = vunpack.c.h.b16 %v194
    %v770 = vunpack.c.l.b16 %v195
    %v771 = vunpack.c.h.b16 %v195
    %v772 = vunpack.c.l.b16 %v196
    %v773 = vunpack.c.h.b16 %v196
    %v774 = vunpack.c.l.b16 %v197
    %v775 = vunpack.c.h.b16 %v197
    %v776 = vunpack.c.l.b16 %v198
    %v777 = vunpack.c.h.b16 %v198
    %v778 = vunpack.c.l.b16 %v199
    %v779 = vunpack.c.h.b16 %v199
    %v780 = vunpack.c.l.b16 %v200
    %v781 = vunpack.c.h.b16 %v200
    %v782 = vunpack.c.l.b16 %v201
    %v783 = vunpack.c.h.b16 %v201
    %v784 = vunpack.c.l.b16 %v202
    %v785 = vunpack.c.h.b16 %v202
    %v786 = vunpack.c.l.b16 %v203
    %v787 = vunpack.c.h.b16 %v203
    %v788 = vunpack.c.l.b16 %v204
    %v789 = vunpack.c.h.b16 %v204
    %v790 = vunpack.c.l.b16 %v205
    %v791 = vunpack.c.h.b16 %v205
    %v792 = vunpack.c.l.b16 %v206
    %v793 = vunpack.c.h.b16 %v206
    %v794 = vunpack.c.l.b16 %v207
    %v795 = vunpack.c.h.b16 %v207
    %v796 = vunpack.c.l.b16 %v208
    %v797 = vunpack.c.h.b16 %v208
    %v798 = vunpack.c.l.b16 %v209
    %v799 = vunpack.c.h.b16 %v209
    %v800 = vunpack.c.l.b16 %v210
    %v801 = vunpack.c.h.b16 %v210
    %v802 = vunpack.c.l.b16 %v211
    %v803 = vunpack.c.h.b16 %v211
    %v804 = vunpack.c.l.b16 %v212
    %v805 = vunpack.c.h.b16 %v212
    %v806 = vunpack.c.l.b16 %v213
    %v807 = vunpack.c.h.b16 %v213
    %v808 = vunpack.c.l.b16 %v214
    %v809 = vunpack.c.h.b16 %v214
    %v810 = vunpack.c.l.b16 %v215
    %v811 = vunpack.c.h.b16 %v215
    %v812 = vunpack.c.l.b16 %v216
    %v813 = vunpack.c.h.b16 %v216
    %v814 = vunpack.c.l.b16 %v217
    %v815 = vunpack.c.h.b16 %v217
    %v816 = vunpack.c.l.b16 %v218
    %v817 = vunpack.c.h.b16 %v218
    %v818 = vunpack.c.l.b16 %v219
    %v819 = vunpack.c.h.b16 %v219
    %v820 = vunpack.c.l.b16 %v220
    %v821 = vunpack.c.h.b16 %v220
    %v822 = vunpack.c.l.b16 %v221
    %v823 = vunpack.c.h.b16 %v221
    %v824 = vunpack.c.l.b16 %v222
    %v825 = vunpack.c.h.b16 %v222
    %v826 = vunpack.c.l.b16 %v223
    %v827 = vunpack.c.h.b16 %v223
    %v828 = vunpack.c.l.b16 %v224
    %v829 = vunpack.c.h.b16 %v224
    %v830 = vunpack.c.l.b16 %v225
    %v831 = vunpack.c.h.b16 %v225
    %v832 = vunpack.c.l.b16 %v226
    %v833 = vunpack.c.h.b16 %v226
    %v834 = vunpack.c.l.b16 %v227
    %v835 = vunpack.c.h.b16 %v227
    %v836 = vunpack.c.l.b16 %v228
    %v837 = vunpack.c.h.b16 %v228
    %v838 = vunpack.c.l.b16 %v229
    %v839 = vunpack.c.h.b16 %v229
    %v840 = vunpack.c.l.b16 %v230
    %v841 = vunpack.c.h.b16 %v230
    %v842 = vunpack.c.l.b16 %v231
    %v843 = vunpack.c.h.b16 %v231
    %v844 = vunpack.c.l.b16 %v232
    %v845 = vunpack.c.h.b16 %v232
    %v846 = vunpack.c.l.b16 %v233
    %v847 = vunpack.c.h.b16 %v233
    %v848 = vunpack.c.l.b16 %v234
    %v849 = vunpack.c.h.b16 %v234
    %v850 = vunpack.c.l.b16 %v235
    %v851 = vunpack.c.h.b16 %v235
    %v852 = vunpack.c.l.b16 %v236
    %v853 = vunpack.c.h.b16 %v236
    %v854 = vunpack.c.l.b16 %v237
    %v855 = vunpack.c.h.b16 %v237
    %v856 = vunpack.c.l.b16 %v238
    %v857 = vunpack.c.h.b16 %v238
    %v858 = vunpack.c.l.b16 %v239
    %v859 = vunpack.c.h.b16 %v239
    %v860 = vunpack.c.l.b16 %v240
    %v861 = vunpack.c.h.b16 %v240
    %v862 = vunpack.c.l.b16 %v241
    %v863 = vunpack.c.h.b16 %v241
    %v864 = vunpack.c.l.b16 %v242
    %v865 = vunpack.c.h.b16 %v242
    %v866 = vunpack.c.l.b16 %v243
    %v867 = vunpack.c.h.b16 %v243
    %v868 = vunpack.c.l.b16 %v244
    %v869 = vunpack.c.h.b16 %v244
    %v870 = vunpack.c.l.b16 %v245
    %v871 = vunpack.c.h.b16 %v245
    %v872 = vunpack.c.l.b16 %v246
    %v873 = vunpack.c.h.b16 %v246
    %v874 = vunpack.c.l.b16 %v247
    %v875 = vunpack.c.h.b16 %v247
    %v876 = vunpack.c.l.b16 %v248
    %v877 = vunpack.c.h.b16 %v248
    %v878 = vunpack.c.l.b16 %v249
    %v879 = vunpack.c.h.b16 %v249
    %v880 = vunpack.c.l.b16 %v250
    %v881 = vunpack.c.h.b16 %v250
    %v882 = vunpack.c.l.b16 %v251
    %v883 = vunpack.c.h.b16 %v251
    %v884 = vunpack.c.l.b16 %v252
    %v885 = vunpack.c.h.b16 %v252
    %v886 = vunpack.c.l.b16 %v253
    %v887 = vunpack.c.h.b16 %v253
    %v888 = vunpack.c.l.b16 %v254
    %v889 = vunpack.c.h.b16 %v254
    %v890 = vunpack.c.l.b16 %v255
    %v891 = vunpack.c.h.b16 %v255
    %v892 = vunpack.c.l.b16 %v256
    %v893 = vunpack.c.h.b16 %v256
    %v894 = vunpack.c.l.b16 %v257
    %v895 = vunpack.c.h.b16 %v257
    %v896 = vunpack.c.l.b16 %v258
    %v897 = vunpack.c.h.b16 %v258
    %v898 = vunpack.c.l.b16 %v259
    %v899 = vunpack.c.h.b16 %v259
    %v900 = vunpack.c.l.b16 %v260
    %v901 = vunpack.c.h.b16 %v260
    %v902 = vunpack.c.l.b16 %v261
    %v903 = vunpack.c.h.b16 %v261
    %v904 = vunpack.c.l.b16 %v262
    %v905 = vunpack.c.h.b16 %v262
    %v906 = vunpack.c.l.b16 %v263
    %v907 = vunpack.c.h.b16 %v263
    %v908 = vunpack.c.l.b16 %v264
    %v909 = vunpack.c.h.b16 %v264
    %v910 = vunpack.c.l.b16 %v265
    %v911 = vunpack.c.h.b16 %v265
    %v912 = vunpack.c.l.b16 %v266
    %v913 = vunpack.c.h.b16 %v266
    %v914 = vunpack.c.l.b16 %v267
    %v915 = vunpack.c.h.b16 %v267
    %v916 = vunpack.c.l.b16 %v268
    %v917 = vunpack.c.h.b16 %v268
    %v918 = vunpack.c.l.b16 %v269
    %v919 = vunpack.c.h.b16 %v269
    %v920 = vunpack.c.l.b16 %v270
    %v921 = vunpack.c.h.b16 %v270
    %v922 = vunpack.c.l.b16 %v271
    %v923 = vunpack.c.h.b16 %v271
    %v924 = vunpack.c.l.b16 %v272
    %v925 = vunpack.c.h.b16 %v272
    %v926 = vunpack.c.l.b16 %v273
    %v927 = vunpack.c.h.b16 %v273
    %v928 = vunpack.c.l.b16 %v274
    %v929 = vunpack.c.h.b16 %v274
    %v930 = vunpack.c.l.b16 %v275
    %v931 = vunpack.c.h.b16 %v275
    %v932 = vunpack.c.l.b16 %v276
    %v933 = vunpack.c.h.b16 %v276
    %v934 = vunpack.c.l.b16 %v277
    %v935 = vunpack.c.h.b16 %v277
    %v936 = vunpack.c.l.b16 %v278
    %v937 = vunpack.c.h.b16 %v278
    %v938 = vunpack.c.l.b16 %v279
    %v939 = vunpack.c.h.b16 %v279
    %v940 = vunpack.c.l.b16 %v280
    %v941 = vunpack.c.h.b16 %v280
    %v942 = vunpack.c.l.b16 %v281
    %v943 = vunpack.c.h.b16 %v281
    %v944 = vunpack.c.l.b16 %v282
    %v945 = vunpack.c.h.b16 %v282
    %v946 = vunpack.c.l.b16 %v283
    %v947 = vunpack.c.h.b16 %v283
    %v948 = vunpack.c.l.b16 %v284
    %v949 = vunpack.c.h.b16 %v284
    %v950 = vunpack.c.l.b16 %v285
    %v951 = vunpack.c.h.b16 %v285
    %v952 = vunpack.c.l.b16 %v286
    %v953 = vunpack.c.h.b16 %v286
    %v954 = vunpack.c.l.b16 %v287
    %v955 = vunpack.c.h.b16 %v287
    %v956 = vunpack.c.l.b16 %v288
    %v957 = vunpack.c.h.b16 %v288
    %v958 = vunpack.c.l.b16 %v289
    %v959 = vunpack.c.h.b16 %v289
    %v960 = vunpack.c.l.b16 %v290
    %v961 = vunpack.c.h.b16 %v290
    %v962 = vunpack.c.l.b16 %v291
    %v963 = vunpack.c.h.b16 %v291
    %v964 = vunpack.c.l.b16 %v292
    %v965 = vunpack.c.h.b16 %v292
    %v966 = vunpack.c.l.b16 %v293
    %v967 = vunpack.c.h.b16 %v293
    %v968 = vunpack.c.l.b16 %v294
    %v969 = vunpack.c.h.b16 %v294
    %v970 = vunpack.c.l.b16 %v295
    %v971 = vunpack.c.h.b16 %v295
    %v972 = vunpack.c.l.b16 %v296
    %v973 = vunpack.c.h.b16 %v296
    %v974 = vunpack.c.l.b16 %v297
    %v975 = vunpack.c.h.b16 %v297
    %v976 = vunpack.c.l.b16 %v298
    %v977 = vunpack.c.h.b16 %v298
    %v978 = vunpack.c.l.b16 %v299
    %v979 = vunpack.c.h.b16 %v299
    %v980 = vunpack.c.l.b16 %v300
    %v981 = vunpack.c.h.b16 %v300
    %v982 = vunpack.c.l.b16 %v301
    %v983 = vunpack.c.h.b16 %v301
    %v984 = vunpack.c.l.b16 %v302
    %v985 = vunpack.c.h.b16 %v302
    %v986 = vunpack.c.l.b16 %v303
    %v987 = vunpack.c.h.b16 %v303
    %v988 = vunpack.c.l.b16 %v304
    %v989 = vunpack.c.h.b16 %v304
    %v990 = vunpack.c.l.b16 %v305
    %v991 = vunpack.c.h.b16 %v305
    %v992 = vunpack.c.l.b16 %v306
    %v993 = vunpack.c.h.b16 %v306
    %v994 = vunpack.c.l.b16 %v307
    %v995 = vunpack.c.h.b16 %v307
    %v996 = vunpack.c.l.b16 %v308
    %v997 = vunpack.c.h.b16 %v308
    %v998 = vunpack.c.l.b16 %v309
    %v999 = vunpack.c.h.b16 %v309
    %v1000 = vunpack.c.l.b16 %v310
    %v1001 = vunpack.c.h.b16 %v310
    %v1002 = vunpack.c.l.b16 %v311
    %v1003 = vunpack.c.h.b16 %v311
    %v1004 = vunpack.c.l.b16 %v312
    %v1005 = vunpack.c.h.b16 %v312
    %v1006 = vunpack.c.l.b16 %v313
    %v1007 = vunpack.c.h.b16 %v313
    %v1008 = vunpack.c.l.b16 %v314
    %v1009 = vunpack.c.h.b16 %v314
    %v1010 = vunpack.c.l.b16 %v315
    %v1011 = vunpack.c.h.b16 %v315
    %v1012 = vunpack.c.l.b16 %v316
    %v1013 = vunpack.c.h.b16 %v316
    %v1014 = vunpack.c.l.b16 %v317
    %v1015 = vunpack.c.h.b16 %v317
    %v1016 = vunpack.c.l.b16 %v318
    %v1017 = vunpack.c.h.b16 %v318
    %v1018 = vunpack.c.l.b16 %v319
    %v1019 = vunpack.c.h.b16 %v319
    %v1020 = vunpack.c.l.b16 %v320
    %v1021 = vunpack.c.h.b16 %v320
    %v1022 = vunpack.c.l.b16 %v321
    %v1023 = vunpack.c.h.b16 %v321
    %v1024 = vunpack.c.l.b16 %v322
    %v1025 = vunpack.c.h.b16 %v322
    %v1026 = vunpack.c.l.b16 %v323
    %v1027 = vunpack.c.h.b16 %v323
    %v1028 = vunpack.c.l.b16 %v324
    %v1029 = vunpack.c.h.b16 %v324
    %v1030 = vunpack.c.l.b16 %v325
    %v1031 = vunpack.c.h.b16 %v325
    %v1032 = vunpack.c.l.b16 %v326
    %v1033 = vunpack.c.h.b16 %v326
    %v1034 = vpack.c.b16 %v590, %v586
    %v1035 = vpack.c.b16 %v591, %v587
    %v1036 = vpack.c.b16 %v592, %v588
    %v1037 = vpack.c.b16 %v593, %v589
    %v1038 = vpack.c.b16 %v598, %v594
    %v1039 = vpack.c.b16 %v599, %v595
    %v1040 = vpack.c.b16 %v600, %v596
    %v1041 = vpack.c.b16 %v601, %v597
    %v1042 = vpack.c.b16 %v606, %v602
    %v1043 = vpack.c.b16 %v607, %v603
    %v1044 = vpack.c.b16 %v608, %v604
    %v1045 = vpack.c.b16 %v609, %v605
    %v1046 = vpack.c.b16 %v614, %v610
    %v1047 = vpack.c.b16 %v615, %v611
    %v1048 = vpack.c.b16 %v616, %v612
    %v1049 = vpack.c.b16 %v617, %v613
    %v1050 = vpack.c.b16 %v622, %v618
    %v1051 = vpack.c.b16 %v623, %v619
    %v1052 = vpack.c.b16 %v624, %v620
    %v1053 = vpack.c.b16 %v625, %v621
    %v1054 = vpack.c.b16 %v630, %v626
    %v1055 = vpack.c.b16 %v631, %v627
    %v1056 = vpack.c.b16 %v632, %v628
    %v1057 = vpack.c.b16 %v633, %v629
    %v1058 = vpack.c.b16 %v638, %v634
    %v1059 = vpack.c.b16 %v639, %v635
    %v1060 = vpack.c.b16 %v640, %v636
    %v1061 = vpack.c.b16 %v641, %v637
    %v1062 = vpack.c.b16 %v646, %v642
    %v1063 = vpack.c.b16 %v647, %v643
    %v1064 = vpack.c.b16 %v648, %v644
    %v1065 = vpack.c.b16 %v649, %v645
    %v1066 = vpack.c.b16 %v654, %v650
    %v1067 = vpack.c.b16 %v655, %v651
    %v1068 = vpack.c.b16 %v656, %v652
    %v1069 = vpack.c.b16 %v657, %v653
    %v1070 = vpack.c.b16 %v662, %v658
    %v1071 = vpack.c.b16 %v663, %v659
    %v1072 = vpack.c.b16 %v664, %v660
    %v1073 = vpack.c.b16 %v665, %v661
    %v1074 = vpack.c.b16 %v670, %v666
    %v1075 = vpack.c.b16 %v671, %v667
    %v1076 = vpack.c.b16 %v672, %v668
    %v1077 = vpack.c.b16 %v673, %v669
    %v1078 = vpack.c.b16 %v678, %v674
    %v1079 = vpack.c.b16 %v679, %v675
    %v1080 = vpack.c.b16 %v680, %v676
    %v1081 = vpack.c.b16 %v681, %v677
    %v1082 = vpack.c.b16 %v686, %v682
    %v1083 = vpack.c.b16 %v687, %v683
    %v1084 = vpack.c.b16 %v688, %v684
    %v1085 = vpack.c.b16 %v689, %v685
    %v1086 = vpack.c.b16 %v694, %v690
    %v1087 = vpack.c.b16 %v695, %v691
    %v1088 = vpack.c.b16 %v696, %v692
    %v1089 = vpack.c.b16 %v697, %v693
    %v1090 = vpack.c.b16 %v702, %v698
    %v1091 = vpack.c.b16 %v703, %v699
    %v1092 = vpack.c.b16 %v704, %v700
    %v1093 = vpack.c.b16 %v705, %v701
    %v1094 = vpack.c.b16 %v710, %v706
    %v1095 = vpack.c.b16 %v711, %v707
    %v1096 = vpack.c.b16 %v712, %v708
    %v1097 = vpack.c.b16 %v713, %v709
    %v1098 = vpack.c.b16 %v718, %v714
    %v1099 = vpack.c.b16 %v719, %v715
    %v1100 = vpack.c.b16 %v720, %v716
    %v1101 = vpack.c.b16 %v721, %v717
    %v1102 = vpack.c.b16 %v726, %v722
    %v1103 = vpack.c.b16 %v727, %v723
    %v1104 = vpack.c.b16 %v728, %v724
    %v1105 = vpack.c.b16 %v729, %v725
    %v1106 = vpack.c.b16 %v734, %v730
    %v1107 = vpack.c.b16 %v735, %v731
    %v1108 = vpack.c.b16 %v736, %v732
    %v1109 = vpack.c.b16 %v737, %v733
    %v1110 = vpack.c.b16 %v742, %v738
    %v1111 = vpack.c.b16 %v743, %v739
    %v1112 = vpack.c.b16 %v744, %v740
    %v1113 = vpack.c.b16 %v745, %v741
    %v1114 = vpack.c.b16 %v750, %v746
    %v1115 = vpack.c.b16 %v751, %v747
    %v1116 = vpack.c.b16 %v752, %v748
    %v1117 = vpack.c.b16 %v753, %v749
    %v1118 = vpack.c.b16 %v758, %v754
    %v1119 = vpack.c.b16 %v759, %v755
    %v1120 = vpack.c.b16 %v760, %v756
    %v1121 = vpack.c.b16 %v761, %v757
    %v1122 = vpack.c.b16 %v766, %v762
    %v1123 = vpack.c.b16 %v767, %v763
    %v1124 = vpack.c.b16 %v768, %v764
    %v1125 = vpack.c.b16 %v769, %v765
    %v1126 = vpack.c.b16 %v774, %v770
    %v1127 = vpack.c.b16 %v775, %v771
    %v1128 = vpack.c.b16 %v776, %v772
    %v1129 = vpack.c.b16 %v777, %v773
    %v1130 = vpack.c.b16 %v782, %v778
    %v1131 = vpack.c.b16 %v783, %v779
    %v1132 = vpack.c.b16 %v784, %v780
    %v1133 = vpack.c.b16 %v785, %v781
    %v1134 = vpack.c.b16 %v790, %v786
    %v1135 = vpack.c.b16 %v791, %v787
    %v1136 = vpack.c.b16 %v792, %v788
    %v1137 = vpack.c.b16 %v793, %v789
    %v1138 = vpack.c.b16 %v798, %v794
    %v1139 = vpack.c.b16 %v799, %v795
    %v1140 = vpack.c.b16 %v800, %v796
    %v1141 = vpack.c.b16 %v801, %v797
    %v1142 = vpack.c.b16 %v806, %v802
    %v1143 = vpack.c.b16 %v807, %v803
    %v1144 = vpack.c.b16 %v808, %v804
    %v1145 = vpack.c.b16 %v809, %v805
    %v1146 = vpack.c.b16 %v814, %v810
    %v1147 = vpack.c.b16 %v815, %v811
    %v1148 = vpack.c.b16 %v816, %v812
    %v1149 = vpack.c.b16 %v817, %v813
    %v1150 = vpack.c.b16 %v822, %v818
    %v1151 = vpack.c.b16 %v823, %v819
    %v1152 = vpack.c.b16 %v824, %v820
    %v1153 = vpack.c.b16 %v825, %v821
    %v1154 = vpack.c.b16 %v830, %v826
    %v1155 = vpack.c.b16 %v831, %v827
    %v1156 = vpack.c.b16 %v832, %v828
    %v1157 = vpack.c.b16 %v833, %v829
    %v1158 = vpack.c.b16 %v838, %v834
    %v1159 = vpack.c.b16 %v839, %v835
    %v1160 = vpack.c.b16 %v840, %v836
    %v1161 = vpack.c.b16 %v841, %v837
    %v1162 = vpack.c.b16 %v846, %v842
    %v1163 = vpack.c.b16 %v847, %v843
    %v1164 = vpack.c.b16 %v848, %v844
    %v1165 = vpack.c.b16 %v849, %v845
    %v1166 = vpack.c.b16 %v854, %v850
    %v1167 = vpack.c.b16 %v855, %v851
    %v1168 = vpack.c.b16 %v856, %v852
    %v1169 = vpack.c.b16 %v857, %v853
    %v1170 = vpack.c.b16 %v862, %v858
    %v1171 = vpack.c.b16 %v863, %v859
    %v1172 = vpack.c.b16 %v864, %v860
    %v1173 = vpack.c.b16 %v865, %v861
    %v1174 = vpack.c.b16 %v870, %v866
    %v1175 = vpack.c.b16 %v871, %v867
    %v1176 = vpack.c.b16 %v872, %v868
    %v1177 = vpack.c.b16 %v873, %v869
    %v1178 = vpack.c.b16 %v878, %v874
    %v1179 = vpack.c.b16 %v879, %v875
    %v1180 = vpack.c.b16 %v880, %v876
    %v1181 = vpack.c.b16 %v881, %v877
    %v1182 = vpack.c.b16 %v886, %v882
    %v1183 = vpack.c.b16 %v887, %v883
    %v1184 = vpack.c.b16 %v888, %v884
    %v1185 = vpack.c.b16 %v889, %v885
    %v1186 = vpack.c.b16 %v894, %v890
    %v1187 = vpack.c.b16 %v895, %v891
    %v1188 = vpack.c.b16 %v896, %v892
    %v1189 = vpack.c.b16 %v897, %v893
    %v1190 = vpack.c.b16 %v902, %v898
    %v1191 = vpack.c.b16 %v903, %v899
    %v1192 = vpack.c.b16 %v904, %v900
    %v1193 = vpack.c.b16 %v905, %v901
    %v1194 = vpack.c.b16 %v910, %v906
    %v1195 = vpack.c.b16 %v911, %v907
    %v1196 = vpack.c.b16 %v912, %v908
    %v1197 = vpack.c.b16 %v913, %v909
    %v1198 = vpack.c.b16 %v918, %v914
    %v1199 = vpack.c.b16 %v919, %v915
    %v1200 = vpack.c.b16 %v920, %v916
    %v1201 = vpack.c.b16 %v921, %v917
    %v1202 = vpack.c.b16 %v926, %v922
    %v1203 = vpack.c.b16 %v927, %v923
    %v1204 = vpack.c.b16 %v928, %v924
    %v1205 = vpack.c.b16 %v929, %v925
    %v1206 = vpack.c.b16 %v934, %v930
    %v1207 = vpack.c.b16 %v935, %v931
    %v1208 = vpack.c.b16 %v936, %v932
    %v1209 = vpack.c.b16 %v937, %v933
    %v1210 = vpack.c.b16 %v942, %v938
    %v1211 = vpack.c.b16 %v943, %v939
    %v1212 = vpack.c.b16 %v944, %v940
    %v1213 = vpack.c.b16 %v945, %v941
    %v1214 = vpack.c.b16 %v950, %v946
    %v1215 = vpack.c.b16 %v951, %v947
    %v1216 = vpack.c.b16 %v952, %v948
    %v1217 = vpack.c.b16 %v953, %v949
    %v1218 = vpack.c.b16 %v958, %v954
    %v1219 = vpack.c.b16 %v959, %v955
    %v1220 = vpack.c.b16 %v960, %v956
    %v1221 = vpack.c.b16 %v961, %v957
    %v1222 = vpack.c.b16 %v966, %v962
    %v1223 = vpack.c.b16 %v967, %v963
    %v1224 = vpack.c.b16 %v968, %v964
    %v1225 = vpack.c.b16 %v969, %v965
    %v1226 = vpack.c.b16 %v974, %v970
    %v1227 = vpack.c.b16 %v975, %v971
    %v1228 = vpack.c.b16 %v976, %v972
    %v1229 = vpack.c.b16 %v977, %v973
    %v1230 = vpack.c.b16 %v982, %v978
    %v1231 = vpack.c.b16 %v983, %v979
    %v1232 = vpack.c.b16 %v984, %v980
    %v1233 = vpack.c.b16 %v985, %v981
    %v1234 = vpack.c.b16 %v990, %v986
    %v1235 = vpack.c.b16 %v991, %v987
    %v1236 = vpack.c.b16 %v992, %v988
    %v1237 = vpack.c.b16 %v993, %v989
    %v1238 = vpack.c.b16 %v998, %v994
    %v1239 = vpack.c.b16 %v999, %v995
    %v1240 = vpack.c.b16 %v1000, %v996
    %v1241 = vpack.c.b16 %v1001, %v997
    %v1242 = vpack.c.b16 %v1006, %v1002
    %v1243 = vpack.c.b16 %v1007, %v1003
    %v1244 = vpack.c.b16 %v1008, %v1004
    %v1245 = vpack.c.b16 %v1009, %v1005
    %v1246 = vpack.c.b16 %v1014, %v1010
    %v1247 = vpack.c.b16 %v1015, %v1011
    %v1248 = vpack.c.b16 %v1016, %v1012
    %v1249 = vpack.c.b16 %v1017, %v1013
    %v1250 = vpack.c.b16 %v1022, %v1018
    %v1251 = vpack.c.b16 %v1023, %v1019
    %v1252 = vpack.c.b16 %v1024, %v1020
    %v1253 = vpack.c.b16 %v1025, %v1021
    %v1254 = vpack.c.b16 %v1030, %v1026
    %v1255 = vpack.c.b16 %v1031, %v1027
    %v1256 = vpack.c.b16 %v1032, %v1028
    %v1257 = vpack.c.b16 %v1033, %v1029
    %1482 = vmatpush.bf16.msra.mxu0 %v1062
    %1483 = vmatpush.bf16.msra.mxu0 %v1058
    %1484 = vmatpush.bf16.msra.mxu0 %v1054
    %1485 = vmatpush.bf16.msra.mxu0 %v1050
    %1486 = vmatpush.bf16.msra.mxu0 %v1046
    %1487 = vmatpush.bf16.msra.mxu0 %v1042
    %1488 = vmatpush.bf16.msra.mxu0 %v1038
    %1489 = vmatpush.bf16.msra.mxu0 %v1034
    %1490 = vmatmul.bf16.gmra.mxu0 %v348
    %v1491 = vpop.f32.mrf.mxu0
    %v1492 = vadd.f32 %v329, %v1491
    %v1493 = vpop.f32.mrf.mxu0
    %1494 = vdwg.mxu0
    %1495 = vmatpush.bf16.msra.mxu0 %v1094
    %1496 = vmatpush.bf16.msra.mxu0 %v1090
    %1497 = vmatpush.bf16.msra.mxu0 %v1086
    %1498 = vmatpush.bf16.msra.mxu0 %v1082
    %1499 = vmatpush.bf16.msra.mxu0 %v1078
    %1500 = vmatpush.bf16.msra.mxu0 %v1074
    %1501 = vmatpush.bf16.msra.mxu0 %v1070
    %1502 = vmatpush.bf16.msra.mxu0 %v1066
    %1503 = vmatmul.bf16.gmra.mxu0 %v349
    %v1504 = vpop.f32.mrf.mxu0
    %v1505 = vadd.f32 %v1492, %v1504
    %v1506 = vpop.f32.mrf.mxu0
    %1507 = vdwg.mxu0
    %1508 = vmatpush.bf16.msra.mxu0 %v1126
    %1509 = vmatpush.bf16.msra.mxu0 %v1122
    %1510 = vmatpush.bf16.msra.mxu0 %v1118
    %1511 = vmatpush.bf16.msra.mxu0 %v1114
    %1512 = vmatpush.bf16.msra.mxu0 %v1110
    %1513 = vmatpush.bf16.msra.mxu0 %v1106
    %1514 = vmatpush.bf16.msra.mxu0 %v1102
    %1515 = vmatpush.bf16.msra.mxu0 %v1098
    %1516 = vmatmul.bf16.gmra.mxu0 %v350
    %v1517 = vpop.f32.mrf.mxu0
    %v1518 = vadd.f32 %v1505, %v1517
    %v1519 = vpop.f32.mrf.mxu0
    %1520 = vdwg.mxu0
    %1521 = vmatpush.bf16.msra.mxu0 %v1158
    %1522 = vmatpush.bf16.msra.mxu0 %v1154
    %1523 = vmatpush.bf16.msra.mxu0 %v1150
    %1524 = vmatpush.bf16.msra.mxu0 %v1146
    %1525 = vmatpush.bf16.msra.mxu0 %v1142
    %1526 = vmatpush.bf16.msra.mxu0 %v1138
    %1527 = vmatpush.bf16.msra.mxu0 %v1134
    %1528 = vmatpush.bf16.msra.mxu0 %v1130
    %1529 = vmatmul.bf16.gmra.mxu0 %v351
    %v1530 = vpop.f32.mrf.mxu0
    %v1531 = vadd.f32 %v1518, %v1530
    %v1532 = vpop.f32.mrf.mxu0
    %1533 = vdwg.mxu0
    %1534 = vmatpush.bf16.msra.mxu0 %v1190
    %1535 = vmatpush.bf16.msra.mxu0 %v1186
    %1536 = vmatpush.bf16.msra.mxu0 %v1182
    %1537 = vmatpush.bf16.msra.mxu0 %v1178
    %1538 = vmatpush.bf16.msra.mxu0 %v1174
    %1539 = vmatpush.bf16.msra.mxu0 %v1170
    %1540 = vmatpush.bf16.msra.mxu0 %v1166
    %1541 = vmatpush.bf16.msra.mxu0 %v1162
    %1542 = vmatmul.bf16.gmra.mxu0 %v352
    %v1543 = vpop.f32.mrf.mxu0
    %v1544 = vadd.f32 %v1531, %v1543
    %v1545 = vpop.f32.mrf.mxu0
    %1546 = vdwg.mxu0
    %1547 = vmatpush.bf16.msra.mxu0 %v1222
    %1548 = vmatpush.bf16.msra.mxu0 %v1218
    %1549 = vmatpush.bf16.msra.mxu0 %v1214
    %1550 = vmatpush.bf16.msra.mxu0 %v1210
    %1551 = vmatpush.bf16.msra.mxu0 %v1206
    %1552 = vmatpush.bf16.msra.mxu0 %v1202
    %1553 = vmatpush.bf16.msra.mxu0 %v1198
    %1554 = vmatpush.bf16.msra.mxu0 %v1194
    %1555 = vmatmul.bf16.gmra.mxu0 %v353
    %v1556 = vpop.f32.mrf.mxu0
    %v1557 = vadd.f32 %v1544, %v1556
    %v1558 = vpop.f32.mrf.mxu0
    %1559 = vdwg.mxu0
    %1560 = vmatpush.bf16.msra.mxu0 %v1254
    %1561 = vmatpush.bf16.msra.mxu0 %v1250
    %1562 = vmatpush.bf16.msra.mxu0 %v1246
    %1563 = vmatpush.bf16.msra.mxu0 %v1242
    %1564 = vmatpush.bf16.msra.mxu0 %v1238
    %1565 = vmatpush.bf16.msra.mxu0 %v1234
    %1566 = vmatpush.bf16.msra.mxu0 %v1230
    %1567 = vmatpush.bf16.msra.mxu0 %v1226
    %1568 = vmatmul.bf16.gmra.mxu0 %v354
    %v1569 = vpop.f32.mrf.mxu0
    %v1570 = vadd.f32 %v1557, %v1569
    %v1571 = vpop.f32.mrf.mxu0
    %1572 = vdwg.mxu0
    %1573 = vmatpush.bf16.msra.mxu0 %v1063
    %1574 = vmatpush.bf16.msra.mxu0 %v1059
    %1575 = vmatpush.bf16.msra.mxu0 %v1055
    %1576 = vmatpush.bf16.msra.mxu0 %v1051
    %1577 = vmatpush.bf16.msra.mxu0 %v1047
    %1578 = vmatpush.bf16.msra.mxu0 %v1043
    %1579 = vmatpush.bf16.msra.mxu0 %v1039
    %1580 = vmatpush.bf16.msra.mxu0 %v1035
    %1581 = vmatmul.bf16.gmra.mxu0 %v348
    %v1582 = vpop.f32.mrf.mxu0
    %v1583 = vadd.f32 %v330, %v1582
    %v1584 = vpop.f32.mrf.mxu0
    %1585 = vdwg.mxu0
    %1586 = vmatpush.bf16.msra.mxu0 %v1095
    %1587 = vmatpush.bf16.msra.mxu0 %v1091
    %1588 = vmatpush.bf16.msra.mxu0 %v1087
    %1589 = vmatpush.bf16.msra.mxu0 %v1083
    %1590 = vmatpush.bf16.msra.mxu0 %v1079
    %1591 = vmatpush.bf16.msra.mxu0 %v1075
    %1592 = vmatpush.bf16.msra.mxu0 %v1071
    %1593 = vmatpush.bf16.msra.mxu0 %v1067
    %1594 = vmatmul.bf16.gmra.mxu0 %v349
    %v1595 = vpop.f32.mrf.mxu0
    %v1596 = vadd.f32 %v1583, %v1595
    %v1597 = vpop.f32.mrf.mxu0
    %1598 = vdwg.mxu0
    %1599 = vmatpush.bf16.msra.mxu0 %v1127
    %1600 = vmatpush.bf16.msra.mxu0 %v1123
    %1601 = vmatpush.bf16.msra.mxu0 %v1119
    %1602 = vmatpush.bf16.msra.mxu0 %v1115
    %1603 = vmatpush.bf16.msra.mxu0 %v1111
    %1604 = vmatpush.bf16.msra.mxu0 %v1107
    %1605 = vmatpush.bf16.msra.mxu0 %v1103
    %1606 = vmatpush.bf16.msra.mxu0 %v1099
    %1607 = vmatmul.bf16.gmra.mxu0 %v350
    %v1608 = vpop.f32.mrf.mxu0
    %v1609 = vadd.f32 %v1596, %v1608
    %v1610 = vpop.f32.mrf.mxu0
    %1611 = vdwg.mxu0
    %1612 = vmatpush.bf16.msra.mxu0 %v1159
    %1613 = vmatpush.bf16.msra.mxu0 %v1155
    %1614 = vmatpush.bf16.msra.mxu0 %v1151
    %1615 = vmatpush.bf16.msra.mxu0 %v1147
    %1616 = vmatpush.bf16.msra.mxu0 %v1143
    %1617 = vmatpush.bf16.msra.mxu0 %v1139
    %1618 = vmatpush.bf16.msra.mxu0 %v1135
    %1619 = vmatpush.bf16.msra.mxu0 %v1131
    %1620 = vmatmul.bf16.gmra.mxu0 %v351
    %v1621 = vpop.f32.mrf.mxu0
    %v1622 = vadd.f32 %v1609, %v1621
    %v1623 = vpop.f32.mrf.mxu0
    %1624 = vdwg.mxu0
    %1625 = vmatpush.bf16.msra.mxu0 %v1191
    %1626 = vmatpush.bf16.msra.mxu0 %v1187
    %1627 = vmatpush.bf16.msra.mxu0 %v1183
    %1628 = vmatpush.bf16.msra.mxu0 %v1179
    %1629 = vmatpush.bf16.msra.mxu0 %v1175
    %1630 = vmatpush.bf16.msra.mxu0 %v1171
    %1631 = vmatpush.bf16.msra.mxu0 %v1167
    %1632 = vmatpush.bf16.msra.mxu0 %v1163
    %1633 = vmatmul.bf16.gmra.mxu0 %v352
    %v1634 = vpop.f32.mrf.mxu0
    %v1635 = vadd.f32 %v1622, %v1634
    %v1636 = vpop.f32.mrf.mxu0
    %1637 = vdwg.mxu0
    %1638 = vmatpush.bf16.msra.mxu0 %v1223
    %1639 = vmatpush.bf16.msra.mxu0 %v1219
    %1640 = vmatpush.bf16.msra.mxu0 %v1215
    %1641 = vmatpush.bf16.msra.mxu0 %v1211
    %1642 = vmatpush.bf16.msra.mxu0 %v1207
    %1643 = vmatpush.bf16.msra.mxu0 %v1203
    %1644 = vmatpush.bf16.msra.mxu0 %v1199
    %1645 = vmatpush.bf16.msra.mxu0 %v1195
    %1646 = vmatmul.bf16.gmra.mxu0 %v353
    %v1647 = vpop.f32.mrf.mxu0
    %v1648 = vadd.f32 %v1635, %v1647
    %v1649 = vpop.f32.mrf.mxu0
    %1650 = vdwg.mxu0
    %1651 = vmatpush.bf16.msra.mxu0 %v1255
    %1652 = vmatpush.bf16.msra.mxu0 %v1251
    %1653 = vmatpush.bf16.msra.mxu0 %v1247
    %1654 = vmatpush.bf16.msra.mxu0 %v1243
    %1655 = vmatpush.bf16.msra.mxu0 %v1239
    %1656 = vmatpush.bf16.msra.mxu0 %v1235
    %1657 = vmatpush.bf16.msra.mxu0 %v1231
    %1658 = vmatpush.bf16.msra.mxu0 %v1227
    %1659 = vmatmul.bf16.gmra.mxu0 %v354
    %v1660 = vpop.f32.mrf.mxu0
    %v1661 = vadd.f32 %v1648, %v1660
    %v1662 = vpop.f32.mrf.mxu0
    %1663 = vdwg.mxu0
    %1664 = vmatpush.bf16.msra.mxu0 %v1064
    %1665 = vmatpush.bf16.msra.mxu0 %v1060
    %1666 = vmatpush.bf16.msra.mxu0 %v1056
    %1667 = vmatpush.bf16.msra.mxu0 %v1052
    %1668 = vmatpush.bf16.msra.mxu0 %v1048
    %1669 = vmatpush.bf16.msra.mxu0 %v1044
    %1670 = vmatpush.bf16.msra.mxu0 %v1040
    %1671 = vmatpush.bf16.msra.mxu0 %v1036
    %1672 = vmatmul.bf16.gmra.mxu0 %v348
    %v1673 = vpop.f32.mrf.mxu0
    %v1674 = vadd.f32 %v331, %v1673
    %v1675 = vpop.f32.mrf.mxu0
    %1676 = vdwg.mxu0
    %1677 = vmatpush.bf16.msra.mxu0 %v1096
    %1678 = vmatpush.bf16.msra.mxu0 %v1092
    %1679 = vmatpush.bf16.msra.mxu0 %v1088
    %1680 = vmatpush.bf16.msra.mxu0 %v1084
    %1681 = vmatpush.bf16.msra.mxu0 %v1080
    %1682 = vmatpush.bf16.msra.mxu0 %v1076
    %1683 = vmatpush.bf16.msra.mxu0 %v1072
    %1684 = vmatpush.bf16.msra.mxu0 %v1068
    %1685 = vmatmul.bf16.gmra.mxu0 %v349
    %v1686 = vpop.f32.mrf.mxu0
    %v1687 = vadd.f32 %v1674, %v1686
    %v1688 = vpop.f32.mrf.mxu0
    %1689 = vdwg.mxu0
    %1690 = vmatpush.bf16.msra.mxu0 %v1128
    %1691 = vmatpush.bf16.msra.mxu0 %v1124
    %1692 = vmatpush.bf16.msra.mxu0 %v1120
    %1693 = vmatpush.bf16.msra.mxu0 %v1116
    %1694 = vmatpush.bf16.msra.mxu0 %v1112
    %1695 = vmatpush.bf16.msra.mxu0 %v1108
    %1696 = vmatpush.bf16.msra.mxu0 %v1104
    %1697 = vmatpush.bf16.msra.mxu0 %v1100
    %1698 = vmatmul.bf16.gmra.mxu0 %v350
    %v1699 = vpop.f32.mrf.mxu0
    %v1700 = vadd.f32 %v1687, %v1699
    %v1701 = vpop.f32.mrf.mxu0
    %1702 = vdwg.mxu0
    %1703 = vmatpush.bf16.msra.mxu0 %v1160
    %1704 = vmatpush.bf16.msra.mxu0 %v1156
    %1705 = vmatpush.bf16.msra.mxu0 %v1152
    %1706 = vmatpush.bf16.msra.mxu0 %v1148
    %1707 = vmatpush.bf16.msra.mxu0 %v1144
    %1708 = vmatpush.bf16.msra.mxu0 %v1140
    %1709 = vmatpush.bf16.msra.mxu0 %v1136
    %1710 = vmatpush.bf16.msra.mxu0 %v1132
    %1711 = vmatmul.bf16.gmra.mxu0 %v351
    %v1712 = vpop.f32.mrf.mxu0
    %v1713 = vadd.f32 %v1700, %v1712
    %v1714 = vpop.f32.mrf.mxu0
    %1715 = vdwg.mxu0
    %1716 = vmatpush.bf16.msra.mxu0 %v1192
    %1717 = vmatpush.bf16.msra.mxu0 %v1188
    %1718 = vmatpush.bf16.msra.mxu0 %v1184
    %1719 = vmatpush.bf16.msra.mxu0 %v1180
    %1720 = vmatpush.bf16.msra.mxu0 %v1176
    %1721 = vmatpush.bf16.msra.mxu0 %v1172
    %1722 = vmatpush.bf16.msra.mxu0 %v1168
    %1723 = vmatpush.bf16.msra.mxu0 %v1164
    %1724 = vmatmul.bf16.gmra.mxu0 %v352
    %v1725 = vpop.f32.mrf.mxu0
    %v1726 = vadd.f32 %v1713, %v1725
    %v1727 = vpop.f32.mrf.mxu0
    %1728 = vdwg.mxu0
    %1729 = vmatpush.bf16.msra.mxu0 %v1224
    %1730 = vmatpush.bf16.msra.mxu0 %v1220
    %1731 = vmatpush.bf16.msra.mxu0 %v1216
    %1732 = vmatpush.bf16.msra.mxu0 %v1212
    %1733 = vmatpush.bf16.msra.mxu0 %v1208
    %1734 = vmatpush.bf16.msra.mxu0 %v1204
    %1735 = vmatpush.bf16.msra.mxu0 %v1200
    %1736 = vmatpush.bf16.msra.mxu0 %v1196
    %1737 = vmatmul.bf16.gmra.mxu0 %v353
    %v1738 = vpop.f32.mrf.mxu0
    %v1739 = vadd.f32 %v1726, %v1738
    %v1740 = vpop.f32.mrf.mxu0
    %1741 = vdwg.mxu0
    %1742 = vmatpush.bf16.msra.mxu0 %v1256
    %1743 = vmatpush.bf16.msra.mxu0 %v1252
    %1744 = vmatpush.bf16.msra.mxu0 %v1248
    %1745 = vmatpush.bf16.msra.mxu0 %v1244
    %1746 = vmatpush.bf16.msra.mxu0 %v1240
    %1747 = vmatpush.bf16.msra.mxu0 %v1236
    %1748 = vmatpush.bf16.msra.mxu0 %v1232
    %1749 = vmatpush.bf16.msra.mxu0 %v1228
    %1750 = vmatmul.bf16.gmra.mxu0 %v354
    %v1751 = vpop.f32.mrf.mxu0
    %v1752 = vadd.f32 %v1739, %v1751
    %v1753 = vpop.f32.mrf.mxu0
    %1754 = vdwg.mxu0
    %1755 = vmatpush.bf16.msra.mxu0 %v1065
    %1756 = vmatpush.bf16.msra.mxu0 %v1061
    %1757 = vmatpush.bf16.msra.mxu0 %v1057
    %1758 = vmatpush.bf16.msra.mxu0 %v1053
    %1759 = vmatpush.bf16.msra.mxu0 %v1049
    %1760 = vmatpush.bf16.msra.mxu0 %v1045
    %1761 = vmatpush.bf16.msra.mxu0 %v1041
    %1762 = vmatpush.bf16.msra.mxu0 %v1037
    %1763 = vmatmul.bf16.gmra.mxu0 %v348
    %v1764 = vpop.f32.mrf.mxu0
    %v1765 = vadd.f32 %v332, %v1764
    %v1766 = vpop.f32.mrf.mxu0
    %1767 = vdwg.mxu0
    %1768 = vmatpush.bf16.msra.mxu0 %v1097
    %1769 = vmatpush.bf16.msra.mxu0 %v1093
    %1770 = vmatpush.bf16.msra.mxu0 %v1089
    %1771 = vmatpush.bf16.msra.mxu0 %v1085
    %1772 = vmatpush.bf16.msra.mxu0 %v1081
    %1773 = vmatpush.bf16.msra.mxu0 %v1077
    %1774 = vmatpush.bf16.msra.mxu0 %v1073
    %1775 = vmatpush.bf16.msra.mxu0 %v1069
    %1776 = vmatmul.bf16.gmra.mxu0 %v349
    %v1777 = vpop.f32.mrf.mxu0
    %v1778 = vadd.f32 %v1765, %v1777
    %v1779 = vpop.f32.mrf.mxu0
    %1780 = vdwg.mxu0
    %1781 = vmatpush.bf16.msra.mxu0 %v1129
    %1782 = vmatpush.bf16.msra.mxu0 %v1125
    %1783 = vmatpush.bf16.msra.mxu0 %v1121
    %1784 = vmatpush.bf16.msra.mxu0 %v1117
    %1785 = vmatpush.bf16.msra.mxu0 %v1113
    %1786 = vmatpush.bf16.msra.mxu0 %v1109
    %1787 = vmatpush.bf16.msra.mxu0 %v1105
    %1788 = vmatpush.bf16.msra.mxu0 %v1101
    %1789 = vmatmul.bf16.gmra.mxu0 %v350
    %v1790 = vpop.f32.mrf.mxu0
    %v1791 = vadd.f32 %v1778, %v1790
    %v1792 = vpop.f32.mrf.mxu0
    %1793 = vdwg.mxu0
    %1794 = vmatpush.bf16.msra.mxu0 %v1161
    %1795 = vmatpush.bf16.msra.mxu0 %v1157
    %1796 = vmatpush.bf16.msra.mxu0 %v1153
    %1797 = vmatpush.bf16.msra.mxu0 %v1149
    %1798 = vmatpush.bf16.msra.mxu0 %v1145
    %1799 = vmatpush.bf16.msra.mxu0 %v1141
    %1800 = vmatpush.bf16.msra.mxu0 %v1137
    %1801 = vmatpush.bf16.msra.mxu0 %v1133
    %1802 = vmatmul.bf16.gmra.mxu0 %v351
    %v1803 = vpop.f32.mrf.mxu0
    %v1804 = vadd.f32 %v1791, %v1803
    %v1805 = vpop.f32.mrf.mxu0
    %1806 = vdwg.mxu0
    %1807 = vmatpush.bf16.msra.mxu0 %v1193
    %1808 = vmatpush.bf16.msra.mxu0 %v1189
    %1809 = vmatpush.bf16.msra.mxu0 %v1185
    %1810 = vmatpush.bf16.msra.mxu0 %v1181
    %1811 = vmatpush.bf16.msra.mxu0 %v1177
    %1812 = vmatpush.bf16.msra.mxu0 %v1173
    %1813 = vmatpush.bf16.msra.mxu0 %v1169
    %1814 = vmatpush.bf16.msra.mxu0 %v1165
    %1815 = vmatmul.bf16.gmra.mxu0 %v352
    %v1816 = vpop.f32.mrf.mxu0
    %v1817 = vadd.f32 %v1804, %v1816
    %v1818 = vpop.f32.mrf.mxu0
    %1819 = vdwg.mxu0
    %1820 = vmatpush.bf16.msra.mxu0 %v1225
    %1821 = vmatpush.bf16.msra.mxu0 %v1221
    %1822 = vmatpush.bf16.msra.mxu0 %v1217
    %1823 = vmatpush.bf16.msra.mxu0 %v1213
    %1824 = vmatpush.bf16.msra.mxu0 %v1209
    %1825 = vmatpush.bf16.msra.mxu0 %v1205
    %1826 = vmatpush.bf16.msra.mxu0 %v1201
    %1827 = vmatpush.bf16.msra.mxu0 %v1197
    %1828 = vmatmul.bf16.gmra.mxu0 %v353
    %v1829 = vpop.f32.mrf.mxu0
    %v1830 = vadd.f32 %v1817, %v1829
    %v1831 = vpop.f32.mrf.mxu0
    %1832 = vdwg.mxu0
    %1833 = vmatpush.bf16.msra.mxu0 %v1257
    %1834 = vmatpush.bf16.msra.mxu0 %v1253
    %1835 = vmatpush.bf16.msra.mxu0 %v1249
    %1836 = vmatpush.bf16.msra.mxu0 %v1245
    %1837 = vmatpush.bf16.msra.mxu0 %v1241
    %1838 = vmatpush.bf16.msra.mxu0 %v1237
    %1839 = vmatpush.bf16.msra.mxu0 %v1233
    %1840 = vmatpush.bf16.msra.mxu0 %v1229
    %1841 = vmatmul.bf16.gmra.mxu0 %v354
    %v1842 = vpop.f32.mrf.mxu0
    %v1843 = vadd.f32 %v1830, %v1842
    %v1844 = vpop.f32.mrf.mxu0
    %1845 = vdwg.mxu0
    %v1846 = vmax.f32 %v1570, 0.0
    %v1847 = vmax.f32 %v1661, 0.0
    %v1848 = vmax.f32 %v1752, 0.0
    %v1849 = vmax.f32 %v1843, 0.0
    %v1850 = vpack.c.bf16 %v1846, %v1846
    %v1851 = vpack.c.bf16 %v1847, %v1847
    %v1852 = vpack.c.bf16 %v1848, %v1848
    %v1853 = vpack.c.bf16 %v1849, %v1849
    %v1854 = vld [vmem:[#allocation9] sm:$0xff]
    %v1855 = vld [vmem:[#allocation9 + $0x8] sm:$0xff]
    %v1856 = vld [vmem:[#allocation9 + $0x10] sm:$0xff]
    %v1857 = vld [vmem:[#allocation9 + $0x18] sm:$0xff]
    %v1858 = vld [vmem:[#allocation9 + $0x20] sm:$0xff]
    %v1859 = vld [vmem:[#allocation9 + $0x28] sm:$0xff]
    %v1860 = vld [vmem:[#allocation9 + $0x30] sm:$0xff]
    %v1861 = vld [vmem:[#allocation9 + $0x38] sm:$0xff]
    %v1862 = vld [vmem:[#allocation9 + $0x40] sm:$0xff]
    %v1863 = vld [vmem:[#allocation9 + $0x48] sm:$0xff]
    %v1864 = vld [vmem:[#allocation9 + $0x50] sm:$0xff]
    %v1865 = vld [vmem:[#allocation9 + $0x58] sm:$0xff]
    %v1866 = vld [vmem:[#allocation9 + $0x60] sm:$0xff]
    %v1867 = vld [vmem:[#allocation9 + $0x68] sm:$0xff]
    %v1868 = vld [vmem:[#allocation9 + $0x70] sm:$0xff]
    %v1869 = vld [vmem:[#allocation9 + $0x78] sm:$0xff]
    %v1870 = vld [vmem:[#allocation9 + $0x80] sm:$0xff]
    %v1871 = vld [vmem:[#allocation9 + $0x88] sm:$0xff]
    %v1872 = vld [vmem:[#allocation9 + $0x90] sm:$0xff]
    %v1873 = vld [vmem:[#allocation9 + $0x98] sm:$0xff]
    %v1874 = vld [vmem:[#allocation9 + $0xa0] sm:$0xff]
    %v1875 = vld [vmem:[#allocation9 + $0xa8] sm:$0xff]
    %v1876 = vld [vmem:[#allocation9 + $0xb0] sm:$0xff]
    %v1877 = vld [vmem:[#allocation9 + $0xb8] sm:$0xff]
    %v1878 = vld [vmem:[#allocation9 + $0xc0] sm:$0xff]
    %v1879 = vld [vmem:[#allocation9 + $0xc8] sm:$0xff]
    %v1880 = vld [vmem:[#allocation9 + $0xd0] sm:$0xff]
    %v1881 = vld [vmem:[#allocation9 + $0xd8] sm:$0xff]
    %v1882 = vld [vmem:[#allocation9 + $0xe0] sm:$0xff]
    %v1883 = vld [vmem:[#allocation9 + $0xe8] sm:$0xff]
    %v1884 = vld [vmem:[#allocation9 + $0xf0] sm:$0xff]
    %v1885 = vld [vmem:[#allocation9 + $0xf8] sm:$0xff]
    %v1886 = vld [vmem:[#allocation9 + $0x100] sm:$0xff]
    %v1887 = vld [vmem:[#allocation9 + $0x108] sm:$0xff]
    %v1888 = vld [vmem:[#allocation9 + $0x110] sm:$0xff]
    %v1889 = vld [vmem:[#allocation9 + $0x118] sm:$0xff]
    %v1890 = vld [vmem:[#allocation9 + $0x120] sm:$0xff]
    %v1891 = vld [vmem:[#allocation9 + $0x128] sm:$0xff]
    %v1892 = vld [vmem:[#allocation9 + $0x130] sm:$0xff]
    %v1893 = vld [vmem:[#allocation9 + $0x138] sm:$0xff]
    %v1894 = vld [vmem:[#allocation9 + $0x140] sm:$0xff]
    %v1895 = vld [vmem:[#allocation9 + $0x148] sm:$0xff]
    %v1896 = vld [vmem:[#allocation9 + $0x150] sm:$0xff]
    %v1897 = vld [vmem:[#allocation9 + $0x158] sm:$0xff]
    %v1898 = vld [vmem:[#allocation9 + $0x160] sm:$0xff]
    %v1899 = vld [vmem:[#allocation9 + $0x168] sm:$0xff]
    %v1900 = vld [vmem:[#allocation9 + $0x170] sm:$0xff]
    %v1901 = vld [vmem:[#allocation9 + $0x178] sm:$0xff]
    %v1902 = vld [vmem:[#allocation9 + $0x180] sm:$0xff]
    %v1903 = vld [vmem:[#allocation9 + $0x188] sm:$0xff]
    %v1904 = vld [vmem:[#allocation9 + $0x190] sm:$0xff]
    %v1905 = vld [vmem:[#allocation9 + $0x198] sm:$0xff]
    %v1906 = vld [vmem:[#allocation9 + $0x1a0] sm:$0xff]
    %v1907 = vld [vmem:[#allocation9 + $0x1a8] sm:$0xff]
    %v1908 = vld [vmem:[#allocation9 + $0x1b0] sm:$0xff]
    %v1909 = vld [vmem:[#allocation9 + $0x1b8] sm:$0xff]
    %v1910 = vld [vmem:[#allocation9 + $0x1c0] sm:$0xff]
    %v1911 = vld [vmem:[#allocation9 + $0x1c8] sm:$0xff]
    %v1912 = vld [vmem:[#allocation9 + $0x1d0] sm:$0xff]
    %v1913 = vld [vmem:[#allocation9 + $0x1d8] sm:$0xff]
    %v1914 = vld [vmem:[#allocation9 + $0x1e0] sm:$0xff]
    %v1915 = vld [vmem:[#allocation9 + $0x1e8] sm:$0xff]
    %v1916 = vld [vmem:[#allocation9 + $0x1f0] sm:$0xff]
    %v1917 = vld [vmem:[#allocation9 + $0x1f8] sm:$0xff]
    %v1918 = vld [vmem:[%s4] sm:$0x3]
    %v1920 = vperm.slane %v1918, 0
    %v1921 = vperm.slane %v1918, 1
    %v1988 = vunpack.c.l.b16 %v1854
    %v1989 = vunpack.c.h.b16 %v1854
    %v1990 = vunpack.c.l.b16 %v1855
    %v1991 = vunpack.c.h.b16 %v1855
    %v1992 = vunpack.c.l.b16 %v1856
    %v1993 = vunpack.c.h.b16 %v1856
    %v1994 = vunpack.c.l.b16 %v1857
    %v1995 = vunpack.c.h.b16 %v1857
    %v1996 = vunpack.c.l.b16 %v1858
    %v1997 = vunpack.c.h.b16 %v1858
    %v1998 = vunpack.c.l.b16 %v1859
    %v1999 = vunpack.c.h.b16 %v1859
    %v2000 = vunpack.c.l.b16 %v1860
    %v2001 = vunpack.c.h.b16 %v1860
    %v2002 = vunpack.c.l.b16 %v1861
    %v2003 = vunpack.c.h.b16 %v1861
    %v2004 = vunpack.c.l.b16 %v1862
    %v2005 = vunpack.c.h.b16 %v1862
    %v2006 = vunpack.c.l.b16 %v1863
    %v2007 = vunpack.c.h.b16 %v1863
    %v2008 = vunpack.c.l.b16 %v1864
    %v2009 = vunpack.c.h.b16 %v1864
    %v2010 = vunpack.c.l.b16 %v1865
    %v2011 = vunpack.c.h.b16 %v1865
    %v2012 = vunpack.c.l.b16 %v1866
    %v2013 = vunpack.c.h.b16 %v1866
    %v2014 = vunpack.c.l.b16 %v1867
    %v2015 = vunpack.c.h.b16 %v1867
    %v2016 = vunpack.c.l.b16 %v1868
    %v2017 = vunpack.c.h.b16 %v1868
    %v2018 = vunpack.c.l.b16 %v1869
    %v2019 = vunpack.c.h.b16 %v1869
    %v2020 = vunpack.c.l.b16 %v1870
    %v2021 = vunpack.c.h.b16 %v1870
    %v2022 = vunpack.c.l.b16 %v1871
    %v2023 = vunpack.c.h.b16 %v1871
    %v2024 = vunpack.c.l.b16 %v1872
    %v2025 = vunpack.c.h.b16 %v1872
    %v2026 = vunpack.c.l.b16 %v1873
    %v2027 = vunpack.c.h.b16 %v1873
    %v2028 = vunpack.c.l.b16 %v1874
    %v2029 = vunpack.c.h.b16 %v1874
    %v2030 = vunpack.c.l.b16 %v1875
    %v2031 = vunpack.c.h.b16 %v1875
    %v2032 = vunpack.c.l.b16 %v1876
    %v2033 = vunpack.c.h.b16 %v1876
    %v2034 = vunpack.c.l.b16 %v1877
    %v2035 = vunpack.c.h.b16 %v1877
    %v2036 = vunpack.c.l.b16 %v1878
    %v2037 = vunpack.c.h.b16 %v1878
    %v2038 = vunpack.c.l.b16 %v1879
    %v2039 = vunpack.c.h.b16 %v1879
    %v2040 = vunpack.c.l.b16 %v1880
    %v2041 = vunpack.c.h.b16 %v1880
    %v2042 = vunpack.c.l.b16 %v1881
    %v2043 = vunpack.c.h.b16 %v1881
    %v2044 = vunpack.c.l.b16 %v1882
    %v2045 = vunpack.c.h.b16 %v1882
    %v2046 = vunpack.c.l.b16 %v1883
    %v2047 = vunpack.c.h.b16 %v1883
    %v2048 = vunpack.c.l.b16 %v1884
    %v2049 = vunpack.c.h.b16 %v1884
    %v2050 = vunpack.c.l.b16 %v1885
    %v2051 = vunpack.c.h.b16 %v1885
    %v2052 = vunpack.c.l.b16 %v1886
    %v2053 = vunpack.c.h.b16 %v1886
    %v2054 = vunpack.c.l.b16 %v1887
    %v2055 = vunpack.c.h.b16 %v1887
    %v2056 = vunpack.c.l.b16 %v1888
    %v2057 = vunpack.c.h.b16 %v1888
    %v2058 = vunpack.c.l.b16 %v1889
    %v2059 = vunpack.c.h.b16 %v1889
    %v2060 = vunpack.c.l.b16 %v1890
    %v2061 = vunpack.c.h.b16 %v1890
    %v2062 = vunpack.c.l.b16 %v1891
    %v2063 = vunpack.c.h.b16 %v1891
    %v2064 = vunpack.c.l.b16 %v1892
    %v2065 = vunpack.c.h.b16 %v1892
    %v2066 = vunpack.c.l.b16 %v1893
    %v2067 = vunpack.c.h.b16 %v1893
    %v2068 = vunpack.c.l.b16 %v1894
    %v2069 = vunpack.c.h.b16 %v1894
    %v2070 = vunpack.c.l.b16 %v1895
    %v2071 = vunpack.c.h.b16 %v1895
    %v2072 = vunpack.c.l.b16 %v1896
    %v2073 = vunpack.c.h.b16 %v1896
    %v2074 = vunpack.c.l.b16 %v1897
    %v2075 = vunpack.c.h.b16 %v1897
    %v2076 = vunpack.c.l.b16 %v1898
    %v2077 = vunpack.c.h.b16 %v1898
    %v2078 = vunpack.c.l.b16 %v1899
    %v2079 = vunpack.c.h.b16 %v1899
    %v2080 = vunpack.c.l.b16 %v1900
    %v2081 = vunpack.c.h.b16 %v1900
    %v2082 = vunpack.c.l.b16 %v1901
    %v2083 = vunpack.c.h.b16 %v1901
    %v2084 = vunpack.c.l.b16 %v1902
    %v2085 = vunpack.c.h.b16 %v1902
    %v2086 = vunpack.c.l.b16 %v1903
    %v2087 = vunpack.c.h.b16 %v1903
    %v2088 = vunpack.c.l.b16 %v1904
    %v2089 = vunpack.c.h.b16 %v1904
    %v2090 = vunpack.c.l.b16 %v1905
    %v2091 = vunpack.c.h.b16 %v1905
    %v2092 = vunpack.c.l.b16 %v1906
    %v2093 = vunpack.c.h.b16 %v1906
    %v2094 = vunpack.c.l.b16 %v1907
    %v2095 = vunpack.c.h.b16 %v1907
    %v2096 = vunpack.c.l.b16 %v1908
    %v2097 = vunpack.c.h.b16 %v1908
    %v2098 = vunpack.c.l.b16 %v1909
    %v2099 = vunpack.c.h.b16 %v1909
    %v2100 = vunpack.c.l.b16 %v1910
    %v2101 = vunpack.c.h.b16 %v1910
    %v2102 = vunpack.c.l.b16 %v1911
    %v2103 = vunpack.c.h.b16 %v1911
    %v2104 = vunpack.c.l.b16 %v1912
    %v2105 = vunpack.c.h.b16 %v1912
    %v2106 = vunpack.c.l.b16 %v1913
    %v2107 = vunpack.c.h.b16 %v1913
    %v2108 = vunpack.c.l.b16 %v1914
    %v2109 = vunpack.c.h.b16 %v1914
    %v2110 = vunpack.c.l.b16 %v1915
    %v2111 = vunpack.c.h.b16 %v1915
    %v2112 = vunpack.c.l.b16 %v1916
    %v2113 = vunpack.c.h.b16 %v1916
    %v2114 = vunpack.c.l.b16 %v1917
    %v2115 = vunpack.c.h.b16 %v1917
    %v2116 = vpack.c.b16 %v1990, %v1988
    %v2117 = vpack.c.b16 %v1991, %v1989
    %v2118 = vpack.c.b16 %v1994, %v1992
    %v2119 = vpack.c.b16 %v1995, %v1993
    %v2120 = vpack.c.b16 %v1998, %v1996
    %v2121 = vpack.c.b16 %v1999, %v1997
    %v2122 = vpack.c.b16 %v2002, %v2000
    %v2123 = vpack.c.b16 %v2003, %v2001
    %v2124 = vpack.c.b16 %v2006, %v2004
    %v2125 = vpack.c.b16 %v2007, %v2005
    %v2126 = vpack.c.b16 %v2010, %v2008
    %v2127 = vpack.c.b16 %v2011, %v2009
    %v2128 = vpack.c.b16 %v2014, %v2012
    %v2129 = vpack.c.b16 %v2015, %v2013
    %v2130 = vpack.c.b16 %v2018, %v2016
    %v2131 = vpack.c.b16 %v2019, %v2017
    %v2132 = vpack.c.b16 %v2022, %v2020
    %v2133 = vpack.c.b16 %v2023, %v2021
    %v2134 = vpack.c.b16 %v2026, %v2024
    %v2135 = vpack.c.b16 %v2027, %v2025
    %v2136 = vpack.c.b16 %v2030, %v2028
    %v2137 = vpack.c.b16 %v2031, %v2029
    %v2138 = vpack.c.b16 %v2034, %v2032
    %v2139 = vpack.c.b16 %v2035, %v2033
    %v2140 = vpack.c.b16 %v2038, %v2036
    %v2141 = vpack.c.b16 %v2039, %v2037
    %v2142 = vpack.c.b16 %v2042, %v2040
    %v2143 = vpack.c.b16 %v2043, %v2041
    %v2144 = vpack.c.b16 %v2046, %v2044
    %v2145 = vpack.c.b16 %v2047, %v2045
    %v2146 = vpack.c.b16 %v2050, %v2048
    %v2147 = vpack.c.b16 %v2051, %v2049
    %v2148 = vpack.c.b16 %v2054, %v2052
    %v2149 = vpack.c.b16 %v2055, %v2053
    %v2150 = vpack.c.b16 %v2058, %v2056
    %v2151 = vpack.c.b16 %v2059, %v2057
    %v2152 = vpack.c.b16 %v2062, %v2060
    %v2153 = vpack.c.b16 %v2063, %v2061
    %v2154 = vpack.c.b16 %v2066, %v2064
    %v2155 = vpack.c.b16 %v2067, %v2065
    %v2156 = vpack.c.b16 %v2070, %v2068
    %v2157 = vpack.c.b16 %v2071, %v2069
    %v2158 = vpack.c.b16 %v2074, %v2072
    %v2159 = vpack.c.b16 %v2075, %v2073
    %v2160 = vpack.c.b16 %v2078, %v2076
    %v2161 = vpack.c.b16 %v2079, %v2077
    %v2162 = vpack.c.b16 %v2082, %v2080
    %v2163 = vpack.c.b16 %v2083, %v2081
    %v2164 = vpack.c.b16 %v2086, %v2084
    %v2165 = vpack.c.b16 %v2087, %v2085
    %v2166 = vpack.c.b16 %v2090, %v2088
    %v2167 = vpack.c.b16 %v2091, %v2089
    %v2168 = vpack.c.b16 %v2094, %v2092
    %v2169 = vpack.c.b16 %v2095, %v2093
    %v2170 = vpack.c.b16 %v2098, %v2096
    %v2171 = vpack.c.b16 %v2099, %v2097
    %v2172 = vpack.c.b16 %v2102, %v2100
    %v2173 = vpack.c.b16 %v2103, %v2101
    %v2174 = vpack.c.b16 %v2106, %v2104
    %v2175 = vpack.c.b16 %v2107, %v2105
    %v2176 = vpack.c.b16 %v2110, %v2108
    %v2177 = vpack.c.b16 %v2111, %v2109
    %v2178 = vpack.c.b16 %v2114, %v2112
    %v2179 = vpack.c.b16 %v2115, %v2113
    %2244 = vmatpush.bf16.msra.mxu0 %v2130
    %2245 = vmatpush.bf16.msra.mxu0 %v2128
    %2246 = vmatpush.bf16.msra.mxu0 %v2126
    %2247 = vmatpush.bf16.msra.mxu0 %v2124
    %2248 = vmatpush.bf16.msra.mxu0 %v2122
    %2249 = vmatpush.bf16.msra.mxu0 %v2120
    %2250 = vmatpush.bf16.msra.mxu0 %v2118
    %2251 = vmatpush.bf16.msra.mxu0 %v2116
    %2252 = vmatmul.bf16.gmra.mxu0 %v1850
    %v2253 = vpop.f32.mrf.mxu0
    %v2254 = vadd.f32 %v1920, %v2253
    %v2255 = vpop.f32.mrf.mxu0
    %2256 = vdwg.mxu0
    %2257 = vmatpush.bf16.msra.mxu0 %v2146
    %2258 = vmatpush.bf16.msra.mxu0 %v2144
    %2259 = vmatpush.bf16.msra.mxu0 %v2142
    %2260 = vmatpush.bf16.msra.mxu0 %v2140
    %2261 = vmatpush.bf16.msra.mxu0 %v2138
    %2262 = vmatpush.bf16.msra.mxu0 %v2136
    %2263 = vmatpush.bf16.msra.mxu0 %v2134
    %2264 = vmatpush.bf16.msra.mxu0 %v2132
    %2265 = vmatmul.bf16.gmra.mxu0 %v1851
    %v2266 = vpop.f32.mrf.mxu0
    %v2267 = vadd.f32 %v2254, %v2266
    %v2268 = vpop.f32.mrf.mxu0
    %2269 = vdwg.mxu0
    %2270 = vmatpush.bf16.msra.mxu0 %v2162
    %2271 = vmatpush.bf16.msra.mxu0 %v2160
    %2272 = vmatpush.bf16.msra.mxu0 %v2158
    %2273 = vmatpush.bf16.msra.mxu0 %v2156
    %2274 = vmatpush.bf16.msra.mxu0 %v2154
    %2275 = vmatpush.bf16.msra.mxu0 %v2152
    %2276 = vmatpush.bf16.msra.mxu0 %v2150
    %2277 = vmatpush.bf16.msra.mxu0 %v2148
    %2278 = vmatmul.bf16.gmra.mxu0 %v1852
    %v2279 = vpop.f32.mrf.mxu0
    %v2280 = vadd.f32 %v2267, %v2279
    %v2281 = vpop.f32.mrf.mxu0
    %2282 = vdwg.mxu0
    %2283 = vmatpush.bf16.msra.mxu0 %v2178
    %2284 = vmatpush.bf16.msra.mxu0 %v2176
    %2285 = vmatpush.bf16.msra.mxu0 %v2174
    %2286 = vmatpush.bf16.msra.mxu0 %v2172
    %2287 = vmatpush.bf16.msra.mxu0 %v2170
    %2288 = vmatpush.bf16.msra.mxu0 %v2168
    %2289 = vmatpush.bf16.msra.mxu0 %v2166
    %2290 = vmatpush.bf16.msra.mxu0 %v2164
    %2291 = vmatmul.bf16.gmra.mxu0 %v1853
    %v2292 = vpop.f32.mrf.mxu0
    %v2293 = vadd.f32 %v2280, %v2292
    %v2294 = vpop.f32.mrf.mxu0
    %2295 = vdwg.mxu0
    %2296 = vmatpush.bf16.msra.mxu0 %v2131
    %2297 = vmatpush.bf16.msra.mxu0 %v2129
    %2298 = vmatpush.bf16.msra.mxu0 %v2127
    %2299 = vmatpush.bf16.msra.mxu0 %v2125
    %2300 = vmatpush.bf16.msra.mxu0 %v2123
    %2301 = vmatpush.bf16.msra.mxu0 %v2121
    %2302 = vmatpush.bf16.msra.mxu0 %v2119
    %2303 = vmatpush.bf16.msra.mxu0 %v2117
    %2304 = vmatmul.bf16.gmra.mxu0 %v1850
    %v2305 = vpop.f32.mrf.mxu0
    %v2306 = vadd.f32 %v1921, %v2305
    %v2307 = vpop.f32.mrf.mxu0
    %2308 = vdwg.mxu0
    %2309 = vmatpush.bf16.msra.mxu0 %v2147
    %2310 = vmatpush.bf16.msra.mxu0 %v2145
    %2311 = vmatpush.bf16.msra.mxu0 %v2143
    %2312 = vmatpush.bf16.msra.mxu0 %v2141
    %2313 = vmatpush.bf16.msra.mxu0 %v2139
    %2314 = vmatpush.bf16.msra.mxu0 %v2137
    %2315 = vmatpush.bf16.msra.mxu0 %v2135
    %2316 = vmatpush.bf16.msra.mxu0 %v2133
    %2317 = vmatmul.bf16.gmra.mxu0 %v1851
    %v2318 = vpop.f32.mrf.mxu0
    %v2319 = vadd.f32 %v2306, %v2318
    %v2320 = vpop.f32.mrf.mxu0
    %2321 = vdwg.mxu0
    %2322 = vmatpush.bf16.msra.mxu0 %v2163
    %2323 = vmatpush.bf16.msra.mxu0 %v2161
    %2324 = vmatpush.bf16.msra.mxu0 %v2159
    %2325 = vmatpush.bf16.msra.mxu0 %v2157
    %2326 = vmatpush.bf16.msra.mxu0 %v2155
    %2327 = vmatpush.bf16.msra.mxu0 %v2153
    %2328 = vmatpush.bf16.msra.mxu0 %v2151
    %2329 = vmatpush.bf16.msra.mxu0 %v2149
    %2330 = vmatmul.bf16.gmra.mxu0 %v1852
    %v2331 = vpop.f32.mrf.mxu0
    %v2332 = vadd.f32 %v2319, %v2331
    %v2333 = vpop.f32.mrf.mxu0
    %2334 = vdwg.mxu0
    %2335 = vmatpush.bf16.msra.mxu0 %v2179
    %2336 = vmatpush.bf16.msra.mxu0 %v2177
    %2337 = vmatpush.bf16.msra.mxu0 %v2175
    %2338 = vmatpush.bf16.msra.mxu0 %v2173
    %2339 = vmatpush.bf16.msra.mxu0 %v2171
    %2340 = vmatpush.bf16.msra.mxu0 %v2169
    %2341 = vmatpush.bf16.msra.mxu0 %v2167
    %2342 = vmatpush.bf16.msra.mxu0 %v2165
    %2343 = vmatmul.bf16.gmra.mxu0 %v1853
    %v2344 = vpop.f32.mrf.mxu0
    %v2345 = vadd.f32 %v2332, %v2344
    %v2346 = vpop.f32.mrf.mxu0
    %2347 = vdwg.mxu0
    %v2348 = vmul.f32 %v2345, 1.442695
    %v2349 = vpow.pop %v2348
    %v2350 = vld [vmem:[#allocation11] sm:$0xff]
    %v2351 = vmul.f32 %v2349, %v2350
    %v2352 = vadd.f32 %v2293, %v2351
    %2353 = vst [vmem:[#allocation12] sm:$0xff] %v2352
    %v2354 = vlaneseq
    %v2355 = vshrl.u32 %v2354, 7
    %s2356 = smul.u32 0, 8
    %v2357 = vstv %s2356
    %v2358 = vadd.s32 %v2355, %v2357
    %v2359 = vlaneseq
    %v2360 = vand.u32 %v2359, 127
    %vm2361 = vcmp.lt.s32.totalorder %v2358, 2
    %vm2362 = vcmp.lt.s32.totalorder %v2360, 2
    %vm2363 = vmand %vm2361, %vm2362
    %v2364 = vmul.f32 %v2349, %v2349
    %v2365 = vmul.f32 %v2293, %v2293
    %v2366 = vadd.f32 %v2364, %v2365
    %v2367 = vsub.f32 %v2366, %v2345
    %v2368 = vsub.f32 %v2367, 0.5
    %v2369 = vsel %vm2363, %v2368, 0.0
    %2370 = vadd.xlane.f32.xlu0 %v2369
    %v2371 = vpop.xlane.xlu0 %2370
    %v2372 = vrot.slane %v2371, 4
    %v2373 = vadd.f32 %v2371, %v2372
    %v2374 = vrot.slane %v2373, 2
    %v2375 = vadd.f32 %v2373, %v2374
    %v2376 = vrot.slane %v2375, 1
    %v2377 = vadd.f32 %v2375, %v2376
    %s2378 = vtos %v2377
    %s2379 = scalar_lea.smem [#allocation13], 0
    %2380 = sst [smem:[%s2379]] %s2378
    // Predicated region
    $region46: #{tpu_custom_call.1} parent=1 // pred_check
      _
    $region47: #{tpu_custom_call.1} parent=1 // pred_check_branch
      %2382 = sbr.rel (0) target = $region49
    $region48: #{tpu_custom_call.1} parent=1 // pred_region
      %2384 = vsyncadd [#allocation4], 0
      %s2386 = sshll.u32 [#allocation12], 4
      %s2387 = int_to_ptr.vmem [resolvable:$true] %s2386
      %s2388 = sshll.u32 %s6, 4
      %s2389 = int_to_ptr.hbm [resolvable:$true] %s2388
      %2391 = dma.vmem_to_hbm [thread:$0]  %s2387, 128, %s2389, [#allocation4]
    $region49: #{tpu_custom_call.1} parent=1 // pred_fallthru
      _
    // Predicated region
    $region50: #{tpu_custom_call.1} parent=1 // pred_check
      _
    $region51: #{tpu_custom_call.1} parent=1 // pred_check_branch
      %2393 = sbr.rel (0) target = $region53
    $region52: #{tpu_custom_call.1} parent=1 // pred_region
      %2395 = vsyncadd [#allocation5], 0
      %s2397 = sshll.u32 %s7, 4
      %s2398 = int_to_ptr.hbm [resolvable:$true] %s2397
      %2400 = dma.smem_to_hbm [#allocation13], 16, %s2398, [#allocation5]
    $region53: #{tpu_custom_call.1} parent=1 // pred_fallthru
      _
    // Predicated region
    $region54: #{tpu_custom_call.1} parent=1 // pred_check
      _
    $region55: #{tpu_custom_call.1} parent=1 // pred_check_branch
      %2402 = sbr.rel (0) target = $region57
    $region56: #{tpu_custom_call.1} parent=1 // pred_region
      %2404 = dma.done [#allocation4], 128
    $region57: #{tpu_custom_call.1} parent=1 // pred_fallthru
      _
    // Predicated region
    $region58: #{tpu_custom_call.1} parent=1 // pred_check
      _
    $region59: #{tpu_custom_call.1} parent=1 // pred_check_branch
      %2406 = sbr.rel (0) target = $region61
    $region60: #{tpu_custom_call.1} parent=1 // pred_region
      %2408 = dma.done [#allocation5], 16
    $region61: #{tpu_custom_call.1} parent=1 // pred_fallthru
      _
    %2409 = sfence
    %2410 = vsyncpa [#allocation3], 1
    %2411 = vsyncpa [#allocation7], 1
    %2412 = vsyncpa [#allocation10], 1
    %2413 = vsyncpa [#allocation4], 1
    %2414 = vsyncpa [#allocation5], 1

</llo_original>
